<compile_context>
chip_gen: v7x
topology: tpu7x:2x2x1
jax: 0.10.0
libtpu: 0.0.40
codegen_flags: <defaults>
</compile_context>

<pallas_src>
import numpy as np
import jax
import jax.numpy as jnp
from jax import lax
from jax.experimental import pallas as pl
from jax.experimental.pallas import tpu as pltpu

NEG_SLOPE = 0.2
EPS = 1e-5


def _lrelu(x):
    return jnp.where(x >= 0, x, NEG_SLOPE * x)


# --------------------------- fused Pallas kernel ------------------------------

def _make_fused_kernel(nb, H, W, Cin, Cout, stride, has_skip):
    assert stride in (1, 2)
    Ho = (H - 1) // stride + 1
    Wo = (W - 1) // stride + 1
    K1 = W * Cin           # conv1 / skip contraction width (one lane-packed image row)
    L = Wo * Cout          # lane-packed output row width (== conv2 contraction width)
    Hp = H + 2

    def body(x_ref, b1_ref, b2_ref, bs_ref, bias_ref, o_ref, xpad_s, hpad_s):
        # ---- zero only the 1-row top/bottom borders, and only once (scratch persists) --
        @pl.when(pl.program_id(0) == 0)
        def _():
            xpad_s[:, pl.ds(0, 1), :] = jnp.zeros((nb, 1, K1), xpad_s.dtype)
            xpad_s[:, pl.ds(H + 1, 1), :] = jnp.zeros((nb, 1, K1), xpad_s.dtype)
            hpad_s[:, pl.ds(0, 1), :] = jnp.zeros((nb, 1, L), hpad_s.dtype)
            hpad_s[:, pl.ds(Ho + 1, 1), :] = jnp.zeros((nb, 1, L), hpad_s.dtype)

        # ---- stage the lane-packed bf16 input into the row-padded scratch --------------
        xpad_s[:, pl.ds(1, H), :] = x_ref[...]

        if stride == 1:
            def conv1_lhs(kh):                   # padded rows kh .. kh+Ho-1
                return xpad_s[:, pl.ds(kh, Ho), :].reshape(nb * Ho, K1)
        else:
            # stride 2: even/odd row-phase decomposition; minor (lane) dim untouched.
            xp4 = xpad_s[...].reshape(nb, Hp // 2, 2, K1)

            def conv1_lhs(kh):                   # padded rows 2*i + kh
                return xp4[:, kh // 2:kh // 2 + Ho, kh % 2, :].reshape(nb * Ho, K1)

        bias = bias_ref[...]                     # (2, L) f32, pre-tiled per lane

        # ---- conv1 (BN1 scale folded into the band) + bias1 + LeakyReLU ----------------
        acc1 = jnp.dot(conv1_lhs(0), b1_ref[0], preferred_element_type=jnp.float32)
        acc1 += jnp.dot(conv1_lhs(1), b1_ref[1], preferred_element_type=jnp.float32)
        acc1 += jnp.dot(conv1_lhs(2), b1_ref[2], preferred_element_type=jnp.float32)
        y1 = _lrelu(acc1 + bias[0:1, :])         # (nb*Ho, L) f32

        # ---- conv1 activation never leaves VMEM: row-padded bf16 scratch ---------------
        hpad_s[:, pl.ds(1, Ho), :] = y1.reshape(nb, Ho, L).astype(hpad_s.dtype)

        # ---- conv2 (BN2 scale folded) + (bias2 + skip bias) -----------------------------
        def conv2_lhs(kh):
            return hpad_s[:, pl.ds(kh, Ho), :].reshape(nb * Ho, L)

        acc2 = jnp.dot(conv2_lhs(0), b2_ref[0], preferred_element_type=jnp.float32)
        acc2 += jnp.dot(conv2_lhs(1), b2_ref[1], preferred_element_type=jnp.float32)
        acc2 += jnp.dot(conv2_lhs(2), b2_ref[2], preferred_element_type=jnp.float32)
        y2 = acc2 + bias[1:2, :]

        # ---- skip path -------------------------------------------------------------------
        if has_skip:
            # 1x1 strided conv (+ folded BN scale): reuses the conv1 kh=1 LHS rows.
            skip = jnp.dot(conv1_lhs(1), bs_ref[...],
                           preferred_element_type=jnp.float32)
        else:
            # identity skip (cin == cout, stride == 1): the lane-packed input itself.
            skip = x_ref[...].reshape(nb * Ho, L).astype(jnp.float32)

        out = _lrelu(y2 + skip)
        o_ref[...] = out.reshape(nb, Ho, L).astype(o_ref.dtype)

    if has_skip:
        def kernel(x_ref, b1_ref, b2_ref, bs_ref, bias_ref, o_ref, xpad_s, hpad_s):
            body(x_ref, b1_ref, b2_ref, bs_ref, bias_ref, o_ref, xpad_s, hpad_s)
    else:
        def kernel(x_ref, b1_ref, b2_ref, bias_ref, o_ref, xpad_s, hpad_s):
            body(x_ref, b1_ref, b2_ref, None, bias_ref, o_ref, xpad_s, hpad_s)

    return kernel, Ho, Wo


# --------------------------- wrapper -------------------------------------------

def residual_block(x_nchw, packed, stride=1):
    """x_nchw: (N, Cin, H, W); `packed` from pack_params().  Returns NCHW bf16."""
    N, Cin, H, W = x_nchw.shape
    Cout = packed["cout"]
    has_skip = packed["has_skip"]
    if stride == 2 and (H % 2 or W % 2):
        raise ValueError("stride=2 path assumes even H, W")

    # bf16 at the boundary (cast BEFORE the transpose -> half the relayout bytes), then
    # lane-pack W*Cin into the minor dim (layout-compatible, free reshape).
    x = jnp.transpose(x_nchw.astype(jnp.bfloat16), (0, 2, 3, 1)).reshape(N, H, W * Cin)

    nb = N      # whole batch per grid step: matmul M = N*Ho, amortizes per-step overhead
    kernel, Ho, Wo = _make_fused_kernel(nb, H, W, Cin, Cout, stride, has_skip)
    K1, L = W * Cin, Wo * Cout

    operands = [x, packed["b1"], packed["b2"]]
    in_specs = [
        pl.BlockSpec((nb, H, K1), lambda n: (n, 0, 0)),
        pl.BlockSpec((3, K1, L), lambda n: (0, 0, 0)),
        pl.BlockSpec((3, L, L), lambda n: (0, 0, 0)),
    ]
    if has_skip:
        operands.append(packed["bs"])
        in_specs.append(pl.BlockSpec((K1, L), lambda n: (0, 0)))
    operands.append(packed["bias"])
    in_specs.append(pl.BlockSpec((2, L), lambda n: (0, 0)))

    out = pl.pallas_call(
        kernel,
        out_shape=jax.ShapeDtypeStruct((N, Ho, L), jnp.bfloat16),
        grid=(N // nb,),
        in_specs=in_specs,
        out_specs=pl.BlockSpec((nb, Ho, L), lambda n: (n, 0, 0)),
        scratch_shapes=[
            pltpu.VMEM((nb, H + 2, K1), jnp.bfloat16),   # row-padded input
            pltpu.VMEM((nb, Ho + 2, L), jnp.bfloat16),   # row-padded conv1 activation
        ],
        compiler_params=pltpu.CompilerParams(
            dimension_semantics=("parallel",),
            vmem_limit_bytes=32 * 1024 * 1024,
        ),
    )(*operands)

    # back to NCHW for the PyTorch-style interface; production models should stay
    # NHWC / lane-packed resident between blocks.
    return jnp.transpose(out.reshape(N, Ho, Wo, Cout), (0, 3, 1, 2))


# --------------------------- parameters -----------------------------------------

def init_params(key, cin, cout, stride):
    ks = list(jax.random.split(key, 18))

    def nrm(k, shape, s=0.1):
        return s * jax.random.normal(k, shape, dtype=jnp.float32)

    p = dict(
        w1=nrm(ks[0], (3, 3, cin, cout)),   # HWIO
        b1=nrm(ks[1], (cout,)),
        g1=1.0 + nrm(ks[2], (cout,)),
        be1=nrm(ks[3], (cout,)),
        m1=nrm(ks[4], (cout,)),
        v1=1.0 + 0.5 * jax.random.uniform(ks[5], (cout,), dtype=jnp.float32),
        w2=nrm(ks[6], (3, 3, cout, cout)),
        b2=nrm(ks[7], (cout,)),
        g2=1.0 + nrm(ks[8], (cout,)),
        be2=nrm(ks[9], (cout,)),
        m2=nrm(ks[10], (cout,)),
        v2=1.0 + 0.5 * jax.random.uniform(ks[11], (cout,), dtype=jnp.float32),
    )
    p["has_skip"] = (stride != 1) or (cin != cout)
    if p["has_skip"]:
        p.update(
            ws=nrm(ks[12], (1, 1, cin, cout)),
            bs=nrm(ks[13], (cout,)),
            gs=1.0 + nrm(ks[14], (cout,)),
            bes=nrm(ks[15], (cout,)),
            ms=nrm(ks[16], (cout,)),
            vs=1.0 + 0.5 * jax.random.uniform(ks[17], (cout,), dtype=jnp.float32),
        )
    return p


def fold_params(p):
    """Fold eval-mode BatchNorm (+ conv bias) into per-channel scale/bias (all f32)."""
    def fold(g, be, m, v, b):
        scale = g / jnp.sqrt(v + EPS)
        bias = be + (b - m) * scale
        return scale, bias

    s1, bi1 = fold(p["g1"], p["be1"], p["m1"], p["v1"], p["b1"])
    s2, bi2 = fold(p["g2"], p["be2"], p["m2"], p["v2"], p["b2"])
    fp = dict(w1=p["w1"], scale1=s1, bias1=bi1,
              w2=p["w2"], scale2=s2, bias2=bi2,
              has_skip=p["has_skip"])
    if p["has_skip"]:
        ss, bis = fold(p["gs"], p["bes"], p["ms"], p["vs"], p["bs"])
        fp.update(wskip=p["ws"], scale_s=ss, bias_s=bis)
    return fp


def _band_3x3(w_hwio, scale, w_in, cin, wo, cout, stride):
    """(3,3,cin,cout) conv weight with folded per-channel scale -> per-kh block-banded
    matrices (3, w_in*cin, wo*cout).  Row index = input column*cin + ci (lane-packed,
    zero-pad columns dropped); col index = output column*cout + co."""
    w = np.asarray(w_hwio, np.float32) * np.asarray(scale, np.float32)[None, None, None, :]
    band = np.zeros((3, w_in * cin, wo * cout), np.float32)
    for kh in range(3):
        for kw in range(3):
            for j in range(wo):
                q = j * stride + kw - 1          # input column; <0 / >=w_in are zero pads
                if 0 <= q < w_in:
                    band[kh, q * cin:(q + 1) * cin, j * cout:(j + 1) * cout] = w[kh, kw]
    return band


def _band_1x1(w_io, scale, w_in, cin, wo, cout, stride):
    """1x1 strided conv weight with folded scale -> (w_in*cin, wo*cout) banded matrix."""
    w = np.asarray(w_io, np.float32).reshape(cin, cout) \
        * np.asarray(scale, np.float32)[None, :]
    band = np.zeros((w_in * cin, wo * cout), np.float32)
    for j in range(wo):
        q = j * stride
        band[q * cin:(q + 1) * cin, j * cout:(j + 1) * cout] = w
    return band


def pack_params(fp, cin, cout, H, W, stride):
    """One-time pack: banded bf16 weights (BN scales folded in f32 first, single bf16
    cast afterwards) and pre-tiled f32 per-lane bias rows."""
    Wo = (W - 1) // stride + 1
    b1 = _band_3x3(fp["w1"], fp["scale1"], W, cin, Wo, cout, stride)
    b2 = _band_3x3(fp["w2"], fp["scale2"], Wo, cout, Wo, cout, 1)
    bias2 = np.asarray(fp["bias2"], np.float32)
    packed = dict(cout=cout, has_skip=fp["has_skip"],
                  b1=jnp.asarray(b1, jnp.bfloat16),
                  b2=jnp.asarray(b2, jnp.bfloat16))
    if fp["has_skip"]:
        bs = _band_1x1(fp["wskip"], fp["scale_s"], W, cin, Wo, cout, stride)
        packed["bs"] = jnp.asarray(bs, jnp.bfloat16)
        bias2 = bias2 + np.asarray(fp["bias_s"], np.float32)   # add skip bias once
    bias = np.stack([np.tile(np.asarray(fp["bias1"], np.float32), Wo),
                     np.tile(bias2, Wo)], axis=0)               # (2, Wo*cout)
    packed["bias"] = jnp.asarray(bias, jnp.float32)
    return packed


# --------------------------- pure-JAX reference -----------------------------------

def reference_forward(x, p, stride):
    def conv(z, w, b, s, pad):
        y = lax.conv_general_dilated(
            z, w, (s, s), [(pad, pad), (pad, pad)],
            dimension_numbers=("NCHW", "HWIO", "NCHW"),
            precision=lax.Precision.HIGHEST)
        return y + b[None, :, None, None]

    def bn(y, g, be, m, v):
        inv = g / jnp.sqrt(v + EPS)
        return (y - m[None, :, None, None]) * inv[None, :, None, None] \
            + be[None, :, None, None]

    if p["has_skip"]:
        idn = bn(conv(x, p["ws"], p["bs"], stride, 0),
                 p["gs"], p["bes"], p["ms"], p["vs"])
    else:
        idn = x
    out = _lrelu(bn(conv(x, p["w1"], p["b1"], stride, 1),
                    p["g1"], p["be1"], p["m1"], p["v1"]))
    out = bn(conv(out, p["w2"], p["b2"], 1, 1),
             p["g2"], p["be2"], p["m2"], p["v2"])
    return _lrelu(out + idn)


# --------------------------- main ---------------------------------------------------

if __name__ == "__main__":
    key = jax.random.PRNGKey(0)

    # (cin, cout, stride): 1x1-conv+BN skip, strided downsample, and identity skip
    configs = [(4, 8, 1), (4, 8, 2), (8, 8, 1)]
    for i, (cin, cout, stride) in enumerate(configs):
        kx, kp = jax.random.split(jax.random.fold_in(key, i))
        x = jax.random.normal(kx, (2, cin, 16, 16), jnp.float32)

        raw = init_params(kp, cin, cout, stride)
        folded = fold_params(raw)
        packed = pack_params(folded, cin, cout, 16, 16, stride)

        out = jax.block_until_ready(residual_block(x, packed, stride=stride))
        ref = reference_forward(x, raw, stride)

        assert out.shape == ref.shape, (out.shape, ref.shape)
        err = float(jnp.max(jnp.abs(out.astype(jnp.float32) - ref)))
        # bf16 boundary I/O + bf16 MXU operands with BN scales folded into bf16 weights,
        # vs an f32 (HIGHEST precision) reference: rounding noise can reach a few 1e-2 at
        # |out|~4; real band-construction / indexing / BN bugs give O(0.1-1) errors.
        if not err < 5e-2:
            raise AssertionError(
                f"mismatch vs reference (cin={cin}, cout={cout}, stride={stride}): {err}")

    print("KERNEL_OK")
</pallas_src>

<mosaic_0001>
module attributes {stable_mosaic.version = 11 : i64} {
  func.func @kernel(%arg0: i32, %arg1: memref<2x16x64xbf16, #tpu.memory_space<vmem>>, %arg2: memref<3x64x128xbf16, #tpu.memory_space<vmem>>, %arg3: memref<3x128x128xbf16, #tpu.memory_space<vmem>>, %arg4: memref<64x128xbf16, #tpu.memory_space<vmem>>, %arg5: memref<2x128xf32, #tpu.memory_space<vmem>>, %arg6: memref<2x16x128xbf16, #tpu.memory_space<vmem>>, %arg7: memref<2x18x64xbf16, #tpu.memory_space<vmem>>, %arg8: memref<2x18x128xbf16, #tpu.memory_space<vmem>>) attributes {dimension_semantics = [#tpu.dimension_semantics<parallel>], iteration_bounds = array<i64: 1>, scalar_prefetch = 0 : i64, scratch_operands = 2 : i64, tpu.core_type = #tpu.core_type<tc>, window_params = [{transform_indices = @transform_0, window_bounds = array<i64: 2, 16, 64>}, {pipeline_mode = #tpu.pipeline_mode<synchronous>, transform_indices = @transform_1, window_bounds = array<i64: 3, 64, 128>}, {pipeline_mode = #tpu.pipeline_mode<synchronous>, transform_indices = @transform_2, window_bounds = array<i64: 3, 128, 128>}, {pipeline_mode = #tpu.pipeline_mode<synchronous>, transform_indices = @transform_3, window_bounds = array<i64: 64, 128>}, {pipeline_mode = #tpu.pipeline_mode<synchronous>, transform_indices = @transform_4, window_bounds = array<i64: 2, 128>}, {transform_indices = @transform_5, window_bounds = array<i64: 2, 16, 128>}]} {
    %c0_i32 = arith.constant 0 : i32
    %0 = arith.cmpi eq, %arg0, %c0_i32 : i32
    %1 = arith.extui %0 : i1 to i32
    %c0_i32_0 = arith.constant 0 : i32
    %2 = arith.cmpi ne, %1, %c0_i32_0 : i32
    scf.if %2 {
      %cst_63 = arith.constant 0.000000e+00 : bf16
      %67 = vector.broadcast %cst_63 : bf16 to vector<2x1x64xbf16>
      %c0_64 = arith.constant 0 : index
      %c0_65 = arith.constant 0 : index
      %c0_66 = arith.constant 0 : index
      %68 = vector.load %arg7[%c0_64, %c0_65, %c0_66] : memref<2x18x64xbf16, #tpu.memory_space<vmem>>, vector<2x1x64xbf16>
      tpu.vector_store %arg7[%c0_64, %c0_65, %c0_66], %67 {strides = array<i32>} : memref<2x18x64xbf16, #tpu.memory_space<vmem>>, vector<2x1x64xbf16>,
      %cst_67 = arith.constant 0.000000e+00 : bf16
      %69 = vector.broadcast %cst_67 : bf16 to vector<2x1x64xbf16>
      %c0_68 = arith.constant 0 : index
      %c17 = arith.constant 17 : index
      %c0_69 = arith.constant 0 : index
      %70 = vector.load %arg7[%c0_68, %c17, %c0_69] : memref<2x18x64xbf16, #tpu.memory_space<vmem>>, vector<2x1x64xbf16>
      tpu.vector_store %arg7[%c0_68, %c17, %c0_69], %69 {strides = array<i32>} : memref<2x18x64xbf16, #tpu.memory_space<vmem>>, vector<2x1x64xbf16>,
      %cst_70 = arith.constant 0.000000e+00 : bf16
      %71 = vector.broadcast %cst_70 : bf16 to vector<2x1x128xbf16>
      %c0_71 = arith.constant 0 : index
      %c0_72 = arith.constant 0 : index
      %c0_73 = arith.constant 0 : index
      %72 = vector.load %arg8[%c0_71, %c0_72, %c0_73] : memref<2x18x128xbf16, #tpu.memory_space<vmem>>, vector<2x1x128xbf16>
      tpu.vector_store %arg8[%c0_71, %c0_72, %c0_73], %71 {strides = array<i32>} : memref<2x18x128xbf16, #tpu.memory_space<vmem>>, vector<2x1x128xbf16>,
      %cst_74 = arith.constant 0.000000e+00 : bf16
      %73 = vector.broadcast %cst_74 : bf16 to vector<2x1x128xbf16>
      %c0_75 = arith.constant 0 : index
      %c17_76 = arith.constant 17 : index
      %c0_77 = arith.constant 0 : index
      %74 = vector.load %arg8[%c0_75, %c17_76, %c0_77] : memref<2x18x128xbf16, #tpu.memory_space<vmem>>, vector<2x1x128xbf16>
      tpu.vector_store %arg8[%c0_75, %c17_76, %c0_77], %73 {strides = array<i32>} : memref<2x18x128xbf16, #tpu.memory_space<vmem>>, vector<2x1x128xbf16>,
    } else {
    }
    %c0 = arith.constant 0 : index
    %c0_1 = arith.constant 0 : index
    %c0_2 = arith.constant 0 : index
    %3 = vector.load %arg1[%c0, %c0_1, %c0_2] : memref<2x16x64xbf16, #tpu.memory_space<vmem>>, vector<2x16x64xbf16>
    %c0_3 = arith.constant 0 : index
    %c1 = arith.constant 1 : index
    %c0_4 = arith.constant 0 : index
    %4 = vector.load %arg7[%c0_3, %c1, %c0_4] : memref<2x18x64xbf16, #tpu.memory_space<vmem>>, vector<2x16x64xbf16>
    tpu.vector_store %arg7[%c0_3, %c1, %c0_4], %3 {strides = array<i32>} : memref<2x18x64xbf16, #tpu.memory_space<vmem>>, vector<2x16x64xbf16>,
    %c0_5 = arith.constant 0 : index
    %c0_6 = arith.constant 0 : index
    %5 = vector.load %arg5[%c0_5, %c0_6] : memref<2x128xf32, #tpu.memory_space<vmem>>, vector<2x128xf32>
    %c0_7 = arith.constant 0 : index
    %c0_8 = arith.constant 0 : index
    %c0_9 = arith.constant 0 : index
    %6 = vector.load %arg7[%c0_7, %c0_8, %c0_9] : memref<2x18x64xbf16, #tpu.memory_space<vmem>>, vector<2x16x64xbf16>
    %7 = vector.shape_cast %6 : vector<2x16x64xbf16> to vector<32x64xbf16>
    %c0_10 = arith.constant 0 : index
    %c0_11 = arith.constant 0 : index
    %c0_12 = arith.constant 0 : index
    %8 = vector.load %arg2[%c0_10, %c0_11, %c0_12] : memref<3x64x128xbf16, #tpu.memory_space<vmem>>, vector<1x64x128xbf16>
    %9 = vector.shape_cast %8 : vector<1x64x128xbf16> to vector<64x128xbf16>
    %cst = arith.constant dense<0.000000e+00> : vector<32x128xf32>
    %10 = tpu.matmul %7, %9, %cst {dimension_numbers = #tpu.dot_dimension_numbers<[1], [0], [0], [1], [0, 0, 1, 1], [], []>} : vector<32x64xbf16>, vector<64x128xbf16>, vector<32x128xf32> -> vector<32x128xf32>
    %c0_13 = arith.constant 0 : index
    %c1_14 = arith.constant 1 : index
    %c0_15 = arith.constant 0 : index
    %11 = vector.load %arg7[%c0_13, %c1_14, %c0_15] : memref<2x18x64xbf16, #tpu.memory_space<vmem>>, vector<2x16x64xbf16>
    %12 = vector.shape_cast %11 : vector<2x16x64xbf16> to vector<32x64xbf16>
    %c1_16 = arith.constant 1 : index
    %c0_17 = arith.constant 0 : index
    %c0_18 = arith.constant 0 : index
    %13 = vector.load %arg2[%c1_16, %c0_17, %c0_18] : memref<3x64x128xbf16, #tpu.memory_space<vmem>>, vector<1x64x128xbf16>
    %14 = vector.shape_cast %13 : vector<1x64x128xbf16> to vector<64x128xbf16>
    %cst_19 = arith.constant dense<0.000000e+00> : vector<32x128xf32>
    %15 = tpu.matmul %12, %14, %cst_19 {dimension_numbers = #tpu.dot_dimension_numbers<[1], [0], [0], [1], [0, 0, 1, 1], [], []>} : vector<32x64xbf16>, vector<64x128xbf16>, vector<32x128xf32> -> vector<32x128xf32>
    %16 = arith.addf %10, %15 : vector<32x128xf32>
    %c0_20 = arith.constant 0 : index
    %c2 = arith.constant 2 : index
    %c0_21 = arith.constant 0 : index
    %17 = vector.load %arg7[%c0_20, %c2, %c0_21] : memref<2x18x64xbf16, #tpu.memory_space<vmem>>, vector<2x16x64xbf16>
    %18 = vector.shape_cast %17 : vector<2x16x64xbf16> to vector<32x64xbf16>
    %c2_22 = arith.constant 2 : index
    %c0_23 = arith.constant 0 : index
    %c0_24 = arith.constant 0 : index
    %19 = vector.load %arg2[%c2_22, %c0_23, %c0_24] : memref<3x64x128xbf16, #tpu.memory_space<vmem>>, vector<1x64x128xbf16>
    %20 = vector.shape_cast %19 : vector<1x64x128xbf16> to vector<64x128xbf16>
    %cst_25 = arith.constant dense<0.000000e+00> : vector<32x128xf32>
    %21 = tpu.matmul %18, %20, %cst_25 {dimension_numbers = #tpu.dot_dimension_numbers<[1], [0], [0], [1], [0, 0, 1, 1], [], []>} : vector<32x64xbf16>, vector<64x128xbf16>, vector<32x128xf32> -> vector<32x128xf32>
    %22 = arith.addf %16, %21 : vector<32x128xf32>
    %23 = vector.extract_strided_slice %5 {offsets = [0, 0], sizes = [1, 128], strides = [1, 1]} : vector<2x128xf32> to vector<1x128xf32>
    %24 = vector.broadcast %23 : vector<1x128xf32> to vector<32x128xf32>
    %25 = arith.addf %22, %24 : vector<32x128xf32>
    %cst_26 = arith.constant 0.000000e+00 : f32
    %26 = vector.broadcast %cst_26 : f32 to vector<32x128xf32>
    %27 = arith.cmpf oge, %25, %26 : vector<32x128xf32>
    %cst_27 = arith.constant 2.000000e-01 : f32
    %28 = vector.broadcast %cst_27 : f32 to vector<32x128xf32>
    %29 = arith.mulf %28, %25 : vector<32x128xf32>
    %30 = arith.select %27, %25, %29 : vector<32x128xi1>, vector<32x128xf32>
    %31 = vector.shape_cast %30 : vector<32x128xf32> to vector<2x16x128xf32>
    %32 = arith.truncf %31 : vector<2x16x128xf32> to vector<2x16x128xbf16>
    %c0_28 = arith.constant 0 : index
    %c1_29 = arith.constant 1 : index
    %c0_30 = arith.constant 0 : index
    %33 = vector.load %arg8[%c0_28, %c1_29, %c0_30] : memref<2x18x128xbf16, #tpu.memory_space<vmem>>, vector<2x16x128xbf16>
    tpu.vector_store %arg8[%c0_28, %c1_29, %c0_30], %32 {strides = array<i32>} : memref<2x18x128xbf16, #tpu.memory_space<vmem>>, vector<2x16x128xbf16>,
    %c0_31 = arith.constant 0 : index
    %c0_32 = arith.constant 0 : index
    %c0_33 = arith.constant 0 : index
    %34 = vector.load %arg8[%c0_31, %c0_32, %c0_33] : memref<2x18x128xbf16, #tpu.memory_space<vmem>>, vector<2x16x128xbf16>
    %35 = vector.shape_cast %34 : vector<2x16x128xbf16> to vector<32x128xbf16>
    %c0_34 = arith.constant 0 : index
    %c0_35 = arith.constant 0 : index
    %c0_36 = arith.constant 0 : index
    %36 = vector.load %arg3[%c0_34, %c0_35, %c0_36] : memref<3x128x128xbf16, #tpu.memory_space<vmem>>, vector<1x128x128xbf16>
    %37 = vector.shape_cast %36 : vector<1x128x128xbf16> to vector<128x128xbf16>
    %cst_37 = arith.constant dense<0.000000e+00> : vector<32x128xf32>
    %38 = tpu.matmul %35, %37, %cst_37 {dimension_numbers = #tpu.dot_dimension_numbers<[1], [0], [0], [1], [0, 0, 1, 1], [], []>} : vector<32x128xbf16>, vector<128x128xbf16>, vector<32x128xf32> -> vector<32x128xf32>
    %c0_38 = arith.constant 0 : index
    %c1_39 = arith.constant 1 : index
    %c0_40 = arith.constant 0 : index
    %39 = vector.load %arg8[%c0_38, %c1_39, %c0_40] : memref<2x18x128xbf16, #tpu.memory_space<vmem>>, vector<2x16x128xbf16>
    %40 = vector.shape_cast %39 : vector<2x16x128xbf16> to vector<32x128xbf16>
    %c1_41 = arith.constant 1 : index
    %c0_42 = arith.constant 0 : index
    %c0_43 = arith.constant 0 : index
    %41 = vector.load %arg3[%c1_41, %c0_42, %c0_43] : memref<3x128x128xbf16, #tpu.memory_space<vmem>>, vector<1x128x128xbf16>
    %42 = vector.shape_cast %41 : vector<1x128x128xbf16> to vector<128x128xbf16>
    %cst_44 = arith.constant dense<0.000000e+00> : vector<32x128xf32>
    %43 = tpu.matmul %40, %42, %cst_44 {dimension_numbers = #tpu.dot_dimension_numbers<[1], [0], [0], [1], [0, 0, 1, 1], [], []>} : vector<32x128xbf16>, vector<128x128xbf16>, vector<32x128xf32> -> vector<32x128xf32>
    %44 = arith.addf %38, %43 : vector<32x128xf32>
    %c0_45 = arith.constant 0 : index
    %c2_46 = arith.constant 2 : index
    %c0_47 = arith.constant 0 : index
    %45 = vector.load %arg8[%c0_45, %c2_46, %c0_47] : memref<2x18x128xbf16, #tpu.memory_space<vmem>>, vector<2x16x128xbf16>
    %46 = vector.shape_cast %45 : vector<2x16x128xbf16> to vector<32x128xbf16>
    %c2_48 = arith.constant 2 : index
    %c0_49 = arith.constant 0 : index
    %c0_50 = arith.constant 0 : index
    %47 = vector.load %arg3[%c2_48, %c0_49, %c0_50] : memref<3x128x128xbf16, #tpu.memory_space<vmem>>, vector<1x128x128xbf16>
    %48 = vector.shape_cast %47 : vector<1x128x128xbf16> to vector<128x128xbf16>
    %cst_51 = arith.constant dense<0.000000e+00> : vector<32x128xf32>
    %49 = tpu.matmul %46, %48, %cst_51 {dimension_numbers = #tpu.dot_dimension_numbers<[1], [0], [0], [1], [0, 0, 1, 1], [], []>} : vector<32x128xbf16>, vector<128x128xbf16>, vector<32x128xf32> -> vector<32x128xf32>
    %50 = arith.addf %44, %49 : vector<32x128xf32>
    %51 = vector.extract_strided_slice %5 {offsets = [1, 0], sizes = [1, 128], strides = [1, 1]} : vector<2x128xf32> to vector<1x128xf32>
    %52 = vector.broadcast %51 : vector<1x128xf32> to vector<32x128xf32>
    %53 = arith.addf %50, %52 : vector<32x128xf32>
    %c0_52 = arith.constant 0 : index
    %c1_53 = arith.constant 1 : index
    %c0_54 = arith.constant 0 : index
    %54 = vector.load %arg7[%c0_52, %c1_53, %c0_54] : memref<2x18x64xbf16, #tpu.memory_space<vmem>>, vector<2x16x64xbf16>
    %55 = vector.shape_cast %54 : vector<2x16x64xbf16> to vector<32x64xbf16>
    %c0_55 = arith.constant 0 : index
    %c0_56 = arith.constant 0 : index
    %56 = vector.load %arg4[%c0_55, %c0_56] : memref<64x128xbf16, #tpu.memory_space<vmem>>, vector<64x128xbf16>
    %cst_57 = arith.constant dense<0.000000e+00> : vector<32x128xf32>
    %57 = tpu.matmul %55, %56, %cst_57 {dimension_numbers = #tpu.dot_dimension_numbers<[1], [0], [0], [1], [0, 0, 1, 1], [], []>} : vector<32x64xbf16>, vector<64x128xbf16>, vector<32x128xf32> -> vector<32x128xf32>
    %58 = arith.addf %53, %57 : vector<32x128xf32>
    %cst_58 = arith.constant 0.000000e+00 : f32
    %59 = vector.broadcast %cst_58 : f32 to vector<32x128xf32>
    %60 = arith.cmpf oge, %58, %59 : vector<32x128xf32>
    %cst_59 = arith.constant 2.000000e-01 : f32
    %61 = vector.broadcast %cst_59 : f32 to vector<32x128xf32>
    %62 = arith.mulf %61, %58 : vector<32x128xf32>
    %63 = arith.select %60, %58, %62 : vector<32x128xi1>, vector<32x128xf32>
    %64 = vector.shape_cast %63 : vector<32x128xf32> to vector<2x16x128xf32>
    %65 = arith.truncf %64 : vector<2x16x128xf32> to vector<2x16x128xbf16>
    %c0_60 = arith.constant 0 : index
    %c0_61 = arith.constant 0 : index
    %c0_62 = arith.constant 0 : index
    %66 = vector.load %arg6[%c0_60, %c0_61, %c0_62] : memref<2x16x128xbf16, #tpu.memory_space<vmem>>, vector<2x16x128xbf16>
    tpu.vector_store %arg6[%c0_60, %c0_61, %c0_62], %65 {strides = array<i32>} : memref<2x16x128xbf16, #tpu.memory_space<vmem>>, vector<2x16x128xbf16>,
    return
  }
  func.func @transform_0(%arg0: i32) -> (i32, i32, i32) {
    %c0_i32 = arith.constant 0 : i32
    %c0_i32_0 = arith.constant 0 : i32
    %c0_i32_1 = arith.constant 0 : i32
    return %arg0, %c0_i32, %c0_i32_0 : i32, i32, i32
  }
  func.func @transform_1(%arg0: i32) -> (i32, i32, i32) {
    %c0_i32 = arith.constant 0 : i32
    %c0_i32_0 = arith.constant 0 : i32
    %c0_i32_1 = arith.constant 0 : i32
    %c0_i32_2 = arith.constant 0 : i32
    return %c0_i32, %c0_i32_0, %c0_i32_1 : i32, i32, i32
  }
  func.func @transform_2(%arg0: i32) -> (i32, i32, i32) {
    %c0_i32 = arith.constant 0 : i32
    %c0_i32_0 = arith.constant 0 : i32
    %c0_i32_1 = arith.constant 0 : i32
    %c0_i32_2 = arith.constant 0 : i32
    return %c0_i32, %c0_i32_0, %c0_i32_1 : i32, i32, i32
  }
  func.func @transform_3(%arg0: i32) -> (i32, i32) {
    %c0_i32 = arith.constant 0 : i32
    %c0_i32_0 = arith.constant 0 : i32
    %c0_i32_1 = arith.constant 0 : i32
    return %c0_i32, %c0_i32_0 : i32, i32
  }
  func.func @transform_4(%arg0: i32) -> (i32, i32) {
    %c0_i32 = arith.constant 0 : i32
    %c0_i32_0 = arith.constant 0 : i32
    %c0_i32_1 = arith.constant 0 : i32
    return %c0_i32, %c0_i32_0 : i32, i32
  }
  func.func @transform_5(%arg0: i32) -> (i32, i32, i32) {
    %c0_i32 = arith.constant 0 : i32
    %c0_i32_0 = arith.constant 0 : i32
    %c0_i32_1 = arith.constant 0 : i32
    return %arg0, %c0_i32, %c0_i32_0 : i32, i32, i32
  }
}

</mosaic_0001>

<llo_original>
// kernel: tpu_custom_call.1
$region0: #{tpu_custom_call.1}
  #allocation0 [shape = 'u32[]', space=smem, size = 0x4, offset = 0x4, fixed_abs, tag = 'smem constant byte address 0x4 - core index']
  #allocation1 [shape = 'u32[144,128]{1,0:T(1,128)}', space=vmem, size = 0x12000, scoped, tag = 'internal scratch']
  #allocation2 [shape = 'bf16[2,18,64]{2,1,0:T(8,128)(2,1)}', space=vmem, size = 0x3000, scoped, tag = 'scratch operand']
  #allocation3 [shape = 'bf16[2,18,128]{2,1,0:T(8,128)(2,1)}', space=vmem, size = 0x3000, scoped, tag = 'scratch operand']
  %s0 = inlined_call_operand.hbm [shape: bf16[2,16,64], index: 0, kind: input, shape index: {}]
  %s1 = inlined_call_operand.hbm [shape: bf16[3,64,128], index: 1, kind: input, shape index: {}]
  %s2 = inlined_call_operand.hbm [shape: bf16[3,128,128], index: 2, kind: input, shape index: {}]
  %s3 = inlined_call_operand.hbm [shape: bf16[64,128], index: 3, kind: input, shape index: {}]
  %s4 = inlined_call_operand.vmem [shape: f32[2,128], index: 4, kind: input, shape index: {}]
  %s5 = inlined_call_operand.hbm [shape: bf16[2,16,128], index: 5, kind: output, shape index: {}]
  %s6 = sld [smem:[#allocation0]]
  $region50: #{tpu_custom_call.1} parent=0
    _
  %s8 = ssub.s32 1, %s6
  %s9 = scalar_select 0, %s8, %s6
  $region1: #{tpu_custom_call.1} parent=0
    #allocation4 [shape = 'u8[8192]{0}', space=vmem, size = 0x2000, scoped, tag = 'input window, operand 0, single buffered']
    #allocation5 [shape = 's32[1]{0}', space=sflag, size = 0x4, scoped, tag = 'scoped memory for tpu_custom_call.1']
    #allocation6 [shape = 's32[1]{0}', space=sflag, size = 0x4, scoped, tag = 'scoped memory for tpu_custom_call.1']
    #allocation7 [shape = 'u8[49152]{0}', space=vmem, size = 0xc000, scoped, tag = 'input window, operand 1, single buffered']
    #allocation8 [shape = 's32[1]{0}', space=sflag, size = 0x4, scoped, tag = 'scoped memory for tpu_custom_call.1']
    #allocation9 [shape = 'u8[98304]{0}', space=vmem, size = 0x18000, scoped, tag = 'input window, operand 2, single buffered']
    #allocation10 [shape = 'u8[16384]{0}', space=vmem, size = 0x4000, scoped, tag = 'input window, operand 3, single buffered']
    #allocation11 [shape = 's32[1]{0}', space=sflag, size = 0x4, scoped, tag = 'scoped memory for tpu_custom_call.1']
    #allocation12 [shape = 'u8[8192]{0}', space=vmem, size = 0x2000, scoped, tag = 'output window, operand 0, single buffered']
    %10 = vsyncpa [#allocation5], 0
    %11 = vsyncpa [#allocation8], 0
    %12 = vsyncpa [#allocation11], 0
    %13 = vsyncpa [#allocation6], 0
    // Predicated region
    $region2: #{tpu_custom_call.1} parent=1 // pred_check
      _
    $region3: #{tpu_custom_call.1} parent=1 // pred_check_branch
      %15 = sbr.rel (0) target = $region5
    $region4: #{tpu_custom_call.1} parent=1 // pred_region
      %s17 = ssub.s32 256, 256
      %18 = vsyncadd [#allocation5], %s17
      %s19 = sshll.u32 [#allocation4], 4
      %s20 = int_to_ptr.vmem [resolvable:$true] %s19
      %25 = dma.hbm_to_vmem [thread:$0]  %s0, 256, %s20, [#allocation5], 64, 64, 4
    $region5: #{tpu_custom_call.1} parent=1 // pred_fallthru
      _
    // Predicated region
    $region6: #{tpu_custom_call.1} parent=1 // pred_check
      _
    $region7: #{tpu_custom_call.1} parent=1 // pred_check_branch
      %27 = sbr.rel (0) target = $region9
    $region8: #{tpu_custom_call.1} parent=1 // pred_region
      %s29 = ssub.s32 1536, 1536
      %30 = vsyncadd [#allocation8], %s29
      %s31 = sshll.u32 [#allocation7], 4
      %s32 = int_to_ptr.vmem [resolvable:$true] %s31
      %37 = dma.hbm_to_vmem [thread:$0]  %s1, 1536, %s32, [#allocation8], 64, 64, 4
    $region9: #{tpu_custom_call.1} parent=1 // pred_fallthru
      _
    // Predicated region
    $region10: #{tpu_custom_call.1} parent=1 // pred_check
      _
    $region11: #{tpu_custom_call.1} parent=1 // pred_check_branch
      %39 = sbr.rel (0) target = $region13
    $region12: #{tpu_custom_call.1} parent=1 // pred_region
      %s41 = ssub.s32 3072, 3072
      %42 = vsyncadd [#allocation8], %s41
      %s43 = sshll.u32 [#allocation9], 4
      %s44 = int_to_ptr.vmem [resolvable:$true] %s43
      %49 = dma.hbm_to_vmem [thread:$0]  %s2, 3072, %s44, [#allocation8], 64, 64, 4
    $region13: #{tpu_custom_call.1} parent=1 // pred_fallthru
      _
    // Predicated region
    $region14: #{tpu_custom_call.1} parent=1 // pred_check
      _
    $region15: #{tpu_custom_call.1} parent=1 // pred_check_branch
      %51 = sbr.rel (0) target = $region17
    $region16: #{tpu_custom_call.1} parent=1 // pred_region
      %s53 = ssub.s32 512, 512
      %54 = vsyncadd [#allocation11], %s53
      %s55 = sshll.u32 [#allocation10], 4
      %s56 = int_to_ptr.vmem [resolvable:$true] %s55
      %61 = dma.hbm_to_vmem [thread:$0]  %s3, 512, %s56, [#allocation11], 64, 64, 4
    $region17: #{tpu_custom_call.1} parent=1 // pred_fallthru
      _
    // Predicated region
    $region18: #{tpu_custom_call.1} parent=1 // pred_check
      _
    $region19: #{tpu_custom_call.1} parent=1 // pred_check_branch
      %63 = sbr.rel (0) target = $region21
    $region20: #{tpu_custom_call.1} parent=1 // pred_region
      _
    $region21: #{tpu_custom_call.1} parent=1 // pred_fallthru
      _
    // Predicated region
    $region22: #{tpu_custom_call.1} parent=1 // pred_check
      _
    $region23: #{tpu_custom_call.1} parent=1 // pred_check_branch
      %65 = sbr.rel (0) target = $region25
    $region24: #{tpu_custom_call.1} parent=1 // pred_region
      %66 = dma.done [#allocation5], 256
    $region25: #{tpu_custom_call.1} parent=1 // pred_fallthru
      _
    // Predicated region
    $region26: #{tpu_custom_call.1} parent=1 // pred_check
      _
    $region27: #{tpu_custom_call.1} parent=1 // pred_check_branch
      %68 = sbr.rel (0) target = $region29
    $region28: #{tpu_custom_call.1} parent=1 // pred_region
      %69 = dma.done [#allocation8], 1536
    $region29: #{tpu_custom_call.1} parent=1 // pred_fallthru
      _
    // Predicated region
    $region30: #{tpu_custom_call.1} parent=1 // pred_check
      _
    $region31: #{tpu_custom_call.1} parent=1 // pred_check_branch
      %71 = sbr.rel (0) target = $region33
    $region32: #{tpu_custom_call.1} parent=1 // pred_region
      %72 = dma.done [#allocation8], 3072
    $region33: #{tpu_custom_call.1} parent=1 // pred_fallthru
      _
    // Predicated region
    $region34: #{tpu_custom_call.1} parent=1 // pred_check
      _
    $region35: #{tpu_custom_call.1} parent=1 // pred_check_branch
      %74 = sbr.rel (0) target = $region37
    $region36: #{tpu_custom_call.1} parent=1 // pred_region
      %75 = dma.done [#allocation11], 512
    $region37: #{tpu_custom_call.1} parent=1 // pred_fallthru
      _
    %p77 = scmp.eq.s32.totalorder 0, 0
    // Predicated region
    $region38: #{tpu_custom_call.1} parent=1 // pred_check
      %p78 = pneg %p77
    $region39: #{tpu_custom_call.1} parent=1 // pred_check_branch
      %80 = sbr.rel (%p78) target = $region41
    $region40: #{tpu_custom_call.1} parent=1 // pred_region
      %vm81 = vcmask 516096
      %vm82 = vsmask.f32 256
      %vm83 = vmand %vm81, %vm82
      %v84 = vld [vmem:[#allocation2] sm:$0x1]
      %v85 = vsel %vm83, 0, %v84
      %86 = vst [vmem:[#allocation2] sm:$0x1] %v85
      %v87 = vld [vmem:[#allocation2 + $0xc] sm:$0x1]
      %v88 = vsel %vm83, 0, %v87
      %89 = vst [vmem:[#allocation2 + $0xc] sm:$0x1] %v88
      %vm90 = vsmask.f32 7938
      %vm91 = vmand %vm81, %vm90
      %v92 = vld [vmem:[#allocation2 + $0x8] sm:$0x1]
      %v93 = vsel %vm91, 0, %v92
      %94 = vst [vmem:[#allocation2 + $0x8] sm:$0x1] %v93
      %v95 = vld [vmem:[#allocation2 + $0x14] sm:$0x1]
      %v96 = vsel %vm91, 0, %v95
      %97 = vst [vmem:[#allocation2 + $0x14] sm:$0x1] %v96
      %vm98 = vcmask 1040384
      %vm99 = vmand %vm98, %vm82
      %v100 = vld [vmem:[#allocation3] sm:$0x1]
      %v101 = vsel %vm99, 0, %v100
      %102 = vst [vmem:[#allocation3] sm:$0x1] %v101
      %v103 = vld [vmem:[#allocation3 + $0xc] sm:$0x1]
      %v104 = vsel %vm99, 0, %v103
      %105 = vst [vmem:[#allocation3 + $0xc] sm:$0x1] %v104
      %vm106 = vmand %vm98, %vm90
      %v107 = vld [vmem:[#allocation3 + $0x8] sm:$0x1]
      %v108 = vsel %vm106, 0, %v107
      %109 = vst [vmem:[#allocation3 + $0x8] sm:$0x1] %v108
      %v110 = vld [vmem:[#allocation3 + $0x14] sm:$0x1]
      %v111 = vsel %vm106, 0, %v110
      %112 = vst [vmem:[#allocation3 + $0x14] sm:$0x1] %v111
    $region41: #{tpu_custom_call.1} parent=1 // pred_fallthru
      _
    %v113 = vld [vmem:[#allocation4] sm:$0xf]
    %v114 = vld [vmem:[#allocation4 + $0x4] sm:$0xf]
    %v115 = vld [vmem:[#allocation4 + $0x8] sm:$0xf]
    %v116 = vld [vmem:[#allocation4 + $0xc] sm:$0xf]
    %vm117 = vsmask.f32 256
    %vm118 = vsmask.f32 4368
    %vm119 = vmor %vm117, %vm118
    %v121 = vshrl.u32 %v113, 16
    %v123 = vrot.slane %v121, 7
    %v124 = vshll.u32 %v113, 16
    %v126 = vor.u32 %v123, %v124
    %v127 = vrot.slane %v123, 4
    %v129 = vshrl.u32 %v114, 16
    %v131 = vrot.slane %v129, 7
    %v132 = vshll.u32 %v114, 16
    %v134 = vor.u32 %v131, %v132
    %v135 = vsel %vm119, %v127, %v134
    %v136 = vrot.slane %v131, 4
    %v138 = vshrl.u32 %v115, 16
    %v140 = vrot.slane %v138, 7
    %v141 = vshll.u32 %v115, 16
    %v143 = vor.u32 %v140, %v141
    %v144 = vrot.slane %v140, 4
    %v146 = vshrl.u32 %v116, 16
    %v148 = vrot.slane %v146, 7
    %v149 = vshll.u32 %v116, 16
    %v151 = vor.u32 %v148, %v149
    %v152 = vsel %vm119, %v144, %v151
    %v153 = vrot.slane %v148, 4
    %vm160 = vcmask 519168
    %vm161 = vsmask.f32 7938
    %vm162 = vmand %vm160, %vm161
    %v163 = vld [vmem:[#allocation2] sm:$0xf]
    %v164 = vsel %vm162, %v126, %v163
    %165 = vst [vmem:[#allocation2] sm:$0xf] %v164
    %vm166 = vcmask 519168
    %167 = vst.msk [vmem:[#allocation2 + $0x4] sm:$0xf] %vm166, %v135
    %vm168 = vcmask 516096
    %vm169 = vmand %vm168, %vm117
    %v170 = vld [vmem:[#allocation2 + $0x8] sm:$0x1]
    %v171 = vsel %vm169, %v136, %v170
    %172 = vst [vmem:[#allocation2 + $0x8] sm:$0x1] %v171
    %v173 = vld [vmem:[#allocation2 + $0xc] sm:$0xf]
    %v174 = vsel %vm162, %v143, %v173
    %175 = vst [vmem:[#allocation2 + $0xc] sm:$0xf] %v174
    %176 = vst.msk [vmem:[#allocation2 + $0x10] sm:$0xf] %vm166, %v152
    %v177 = vld [vmem:[#allocation2 + $0x14] sm:$0x1]
    %v178 = vsel %vm169, %v153, %v177
    %179 = vst [vmem:[#allocation2 + $0x14] sm:$0x1] %v178
    %v180 = vld [vmem:[%s4] sm:$0x3]
    %v181 = vld [vmem:[#allocation2] sm:$0xf]
    %v182 = vld [vmem:[#allocation2 + $0x4] sm:$0xf]
    %v183 = vld [vmem:[#allocation2 + $0xc] sm:$0xf]
    %v184 = vld [vmem:[#allocation2 + $0x10] sm:$0xf]
    %v185 = vld [vmem:[#allocation7] sm:$0xf]
    %v186 = vld [vmem:[#allocation7 + $0x4] sm:$0xf]
    %v187 = vld [vmem:[#allocation7 + $0x8] sm:$0xf]
    %v188 = vld [vmem:[#allocation7 + $0xc] sm:$0xf]
    %v189 = vld [vmem:[#allocation7 + $0x10] sm:$0xf]
    %v190 = vld [vmem:[#allocation7 + $0x14] sm:$0xf]
    %v191 = vld [vmem:[#allocation7 + $0x18] sm:$0xf]
    %v192 = vld [vmem:[#allocation7 + $0x1c] sm:$0xf]
    %v193 = vld [vmem:[#allocation2 + $0x8] sm:$0x1]
    %v194 = vld [vmem:[#allocation2 + $0x14] sm:$0x1]
    %vm195 = vsmask.f32 3328
    %vm196 = vsmask.f32 7440
    %vm197 = vmor %vm195, %vm196
    %v199 = vshrl.u32 %v181, 16
    %v201 = vrot.slane %v199, 4
    %v202 = vshll.u32 %v181, 16
    %v204 = vrot.slane %v202, 5
    %v205 = vor.u32 %v201, %v204
    %v206 = vrot.slane %v205, 4
    %v208 = vshll.u32 %v182, 16
    %v210 = vrot.slane %v208, 5
    %v211 = vsel %vm197, %v206, %v210
    %v212 = vshrl.u32 %v182, 16
    %v214 = vrot.slane %v212, 4
    %v215 = vor.u32 %v214, %v210
    %v216 = vrot.slane %v215, 4
    %v218 = vshll.u32 %v193, 16
    %v220 = vrot.slane %v218, 5
    %v221 = vsel %vm197, %v216, %v220
    %v223 = vshrl.u32 %v183, 16
    %v225 = vrot.slane %v223, 4
    %v226 = vshll.u32 %v183, 16
    %v228 = vrot.slane %v226, 5
    %v229 = vor.u32 %v225, %v228
    %v230 = vrot.slane %v229, 4
    %v232 = vshll.u32 %v184, 16
    %v234 = vrot.slane %v232, 5
    %v235 = vsel %vm197, %v230, %v234
    %v236 = vshrl.u32 %v184, 16
    %v238 = vrot.slane %v236, 4
    %v239 = vor.u32 %v238, %v234
    %v240 = vrot.slane %v239, 4
    %v242 = vshll.u32 %v194, 16
    %v244 = vrot.slane %v242, 5
    %v245 = vsel %vm197, %v240, %v244
    %s246 = scalar_lea.vmem [#allocation7], 32
    %v247 = vld [vmem:[%s246] sm:$0xf]
    %v248 = vld [vmem:[%s246 + $0x4] sm:$0xf]
    %v249 = vld [vmem:[%s246 + $0x8] sm:$0xf]
    %v250 = vld [vmem:[%s246 + $0xc] sm:$0xf]
    %v251 = vld [vmem:[%s246 + $0x10] sm:$0xf]
    %v252 = vld [vmem:[%s246 + $0x14] sm:$0xf]
    %v253 = vld [vmem:[%s246 + $0x18] sm:$0xf]
    %v254 = vld [vmem:[%s246 + $0x1c] sm:$0xf]
    %v255 = vunpack.c.l.b16 %v211
    %v256 = vunpack.c.l.b16 %v221
    %v257 = vunpack.c.l.b16 %v235
    %v258 = vunpack.c.l.b16 %v245
    %v259 = vpack.c.b16 %v256, %v255
    %v260 = vpack.c.b16 %v258, %v257
    %v269 = vunpack.c.l.b16 %v247
    %v270 = vunpack.c.l.b16 %v248
    %v271 = vunpack.c.l.b16 %v249
    %v272 = vunpack.c.l.b16 %v250
    %v273 = vunpack.c.l.b16 %v251
    %v274 = vunpack.c.l.b16 %v252
    %v275 = vunpack.c.l.b16 %v253
    %v276 = vunpack.c.l.b16 %v254
    %v277 = vpack.c.b16 %v270, %v269
    %v278 = vpack.c.b16 %v272, %v271
    %v279 = vpack.c.b16 %v274, %v273
    %v280 = vpack.c.b16 %v276, %v275
    %vm285 = vcmask 523264
    %v287 = vsel %vm285, %v259, 0
    %v290 = vsel %vm285, %v260, 0
    %292 = vmatprep.subr.bf16.mxu0 0
    %293 = vmatpush1.bf16.msra.mxu0 %v277
    %294 = vmatprep.subr.bf16.mxu0 0
    %295 = vmatpush1.bf16.msra.mxu0 %v278
    %296 = vmatprep.subr.bf16.mxu0 0
    %297 = vmatpush1.bf16.msra.mxu0 %v279
    %298 = vmatprep.subr.bf16.mxu0 0
    %299 = vmatpush1.bf16.msra.mxu0 %v280
    %300 = vmatprep.subr.bf16.mxu0 0
    %301 = vmatpush1.bf16.msra.mxu0 0
    %302 = vmatprep.subr.bf16.mxu0 0
    %303 = vmatpush1.bf16.msra.mxu0 0
    %304 = vmatprep.subr.bf16.mxu0 0
    %305 = vmatpush1.bf16.msra.mxu0 0
    %306 = vmatprep.subr.bf16.mxu0 0
    %307 = vmatpush1.bf16.msra.mxu0 0
    %308 = vmatprep.subr.bf16.mxu0 0
    %309 = vmatpush1.bf16.msra.mxu0 0
    %310 = vmatprep.subr.bf16.mxu0 0
    %311 = vmatpush1.bf16.msra.mxu0 0
    %312 = vmatprep.subr.bf16.mxu0 0
    %313 = vmatpush1.bf16.msra.mxu0 0
    %314 = vmatprep.subr.bf16.mxu0 0
    %315 = vmatpush1.bf16.msra.mxu0 0
    %316 = vmatprep.subr.bf16.mxu0 0
    %317 = vmatpush1.bf16.msra.mxu0 0
    %318 = vmatprep.subr.bf16.mxu0 0
    %319 = vmatpush1.bf16.msra.mxu0 0
    %320 = vmatprep.subr.bf16.mxu0 0
    %321 = vmatpush1.bf16.msra.mxu0 0
    %322 = vmatprep.subr.bf16.mxu0 0
    %323 = vmatpush1.bf16.msra.mxu0 0
    %324 = vmatprep.mubr.bf16.mxu0 0
    %325 = vmatmul.mubr.bf16.gmra.mrb[0].mxu0 %v287
    %v326 = vpop.f32.mrb[0].mxu0
    %v327 = vadd.f32 0.0, %v326
    %v328 = vpop.f32.mrb[0].mxu0
    %v329 = vpop.f32.mrb[0].mxu0
    %v330 = vadd.f32 0.0, %v329
    %v331 = vpop.f32.mrb[0].mxu0
    %332 = vmatprep.mubr.bf16.mxu0 0
    %333 = vmatmul.mubr.bf16.gmra.mrb[0].mxu0 %v290
    %v334 = vpop.f32.mrb[0].mxu0
    %v335 = vadd.f32 0.0, %v334
    %v336 = vpop.f32.mrb[0].mxu0
    %v337 = vpop.f32.mrb[0].mxu0
    %v338 = vadd.f32 0.0, %v337
    %v339 = vpop.f32.mrb[0].mxu0
    %340 = vdwg.mxu0
    %v345 = vunpack.c.l.b16 %v181
    %v346 = vunpack.c.l.b16 %v182
    %v347 = vunpack.c.l.b16 %v183
    %v348 = vunpack.c.l.b16 %v184
    %v349 = vpack.c.b16 %v346, %v345
    %v350 = vpack.c.b16 %v348, %v347
    %v359 = vunpack.c.l.b16 %v185
    %v360 = vunpack.c.l.b16 %v186
    %v361 = vunpack.c.l.b16 %v187
    %v362 = vunpack.c.l.b16 %v188
    %v363 = vunpack.c.l.b16 %v189
    %v364 = vunpack.c.l.b16 %v190
    %v365 = vunpack.c.l.b16 %v191
    %v366 = vunpack.c.l.b16 %v192
    %v367 = vpack.c.b16 %v360, %v359
    %v368 = vpack.c.b16 %v362, %v361
    %v369 = vpack.c.b16 %v364, %v363
    %v370 = vpack.c.b16 %v366, %v365
    %v376 = vsel %vm285, %v349, 0
    %v379 = vsel %vm285, %v350, 0
    %381 = vmatprep.subr.bf16.mxu0 0
    %382 = vmatpush1.bf16.msra.mxu0 %v367
    %383 = vmatprep.subr.bf16.mxu0 0
    %384 = vmatpush1.bf16.msra.mxu0 %v368
    %385 = vmatprep.subr.bf16.mxu0 0
    %386 = vmatpush1.bf16.msra.mxu0 %v369
    %387 = vmatprep.subr.bf16.mxu0 0
    %388 = vmatpush1.bf16.msra.mxu0 %v370
    %389 = vmatprep.subr.bf16.mxu0 0
    %390 = vmatpush1.bf16.msra.mxu0 0
    %391 = vmatprep.subr.bf16.mxu0 0
    %392 = vmatpush1.bf16.msra.mxu0 0
    %393 = vmatprep.subr.bf16.mxu0 0
    %394 = vmatpush1.bf16.msra.mxu0 0
    %395 = vmatprep.subr.bf16.mxu0 0
    %396 = vmatpush1.bf16.msra.mxu0 0
    %397 = vmatprep.subr.bf16.mxu0 0
    %398 = vmatpush1.bf16.msra.mxu0 0
    %399 = vmatprep.subr.bf16.mxu0 0
    %400 = vmatpush1.bf16.msra.mxu0 0
    %401 = vmatprep.subr.bf16.mxu0 0
    %402 = vmatpush1.bf16.msra.mxu0 0
    %403 = vmatprep.subr.bf16.mxu0 0
    %404 = vmatpush1.bf16.msra.mxu0 0
    %405 = vmatprep.subr.bf16.mxu0 0
    %406 = vmatpush1.bf16.msra.mxu0 0
    %407 = vmatprep.subr.bf16.mxu0 0
    %408 = vmatpush1.bf16.msra.mxu0 0
    %409 = vmatprep.subr.bf16.mxu0 0
    %410 = vmatpush1.bf16.msra.mxu0 0
    %411 = vmatprep.subr.bf16.mxu0 0
    %412 = vmatpush1.bf16.msra.mxu0 0
    %413 = vmatprep.mubr.bf16.mxu0 0
    %414 = vmatmul.mubr.bf16.gmra.mrb[0].mxu0 %v376
    %v415 = vpop.f32.mrb[0].mxu0
    %v416 = vadd.f32 %v327, %v415
    %v417 = vpop.f32.mrb[0].mxu0
    %v418 = vpop.f32.mrb[0].mxu0
    %v419 = vadd.f32 %v330, %v418
    %v420 = vpop.f32.mrb[0].mxu0
    %421 = vmatprep.mubr.bf16.mxu0 0
    %422 = vmatmul.mubr.bf16.gmra.mrb[0].mxu0 %v379
    %v423 = vpop.f32.mrb[0].mxu0
    %v424 = vadd.f32 %v335, %v423
    %v425 = vpop.f32.mrb[0].mxu0
    %v426 = vpop.f32.mrb[0].mxu0
    %v427 = vadd.f32 %v338, %v426
    %v428 = vpop.f32.mrb[0].mxu0
    %429 = vdwg.mxu0
    %v430 = vld [vmem:[#allocation2] sm:$0xe]
    %v431 = vld [vmem:[#allocation2 + $0xc] sm:$0xe]
    %vm436 = vcmask 1042432
    %vm437 = vcmask 1046532
    %vm438 = vmor %vm436, %vm437
    %v439 = vrot.slane %v430, 5
    %v440 = vrot.slane %v439, 4
    %v441 = vrot.slane %v182, 5
    %v442 = vsel %vm438, %v440, %v441
    %v443 = vrot.slane %v441, 4
    %v444 = vrot.slane %v193, 5
    %v445 = vsel %vm438, %v443, %v444
    %v446 = vrot.slane %v431, 5
    %v447 = vrot.slane %v446, 4
    %v448 = vrot.slane %v184, 5
    %v449 = vsel %vm438, %v447, %v448
    %v450 = vrot.slane %v448, 4
    %v451 = vrot.slane %v194, 5
    %v452 = vsel %vm438, %v450, %v451
    %s453 = scalar_lea.vmem [#allocation7], 64
    %v454 = vld [vmem:[%s453] sm:$0xf]
    %v455 = vld [vmem:[%s453 + $0x4] sm:$0xf]
    %v456 = vld [vmem:[%s453 + $0x8] sm:$0xf]
    %v457 = vld [vmem:[%s453 + $0xc] sm:$0xf]
    %v458 = vld [vmem:[%s453 + $0x10] sm:$0xf]
    %v459 = vld [vmem:[%s453 + $0x14] sm:$0xf]
    %v460 = vld [vmem:[%s453 + $0x18] sm:$0xf]
    %v461 = vld [vmem:[%s453 + $0x1c] sm:$0xf]
    %v462 = vunpack.c.l.b16 %v442
    %v463 = vunpack.c.l.b16 %v445
    %v464 = vunpack.c.l.b16 %v449
    %v465 = vunpack.c.l.b16 %v452
    %v466 = vpack.c.b16 %v463, %v462
    %v467 = vpack.c.b16 %v465, %v464
    %v476 = vunpack.c.l.b16 %v454
    %v477 = vunpack.c.l.b16 %v455
    %v478 = vunpack.c.l.b16 %v456
    %v479 = vunpack.c.l.b16 %v457
    %v480 = vunpack.c.l.b16 %v458
    %v481 = vunpack.c.l.b16 %v459
    %v482 = vunpack.c.l.b16 %v460
    %v483 = vunpack.c.l.b16 %v461
    %v484 = vpack.c.b16 %v477, %v476
    %v485 = vpack.c.b16 %v479, %v478
    %v486 = vpack.c.b16 %v481, %v480
    %v487 = vpack.c.b16 %v483, %v482
    %v493 = vsel %vm285, %v466, 0
    %v496 = vsel %vm285, %v467, 0
    %498 = vmatprep.subr.bf16.mxu0 0
    %499 = vmatpush1.bf16.msra.mxu0 %v484
    %500 = vmatprep.subr.bf16.mxu0 0
    %501 = vmatpush1.bf16.msra.mxu0 %v485
    %502 = vmatprep.subr.bf16.mxu0 0
    %503 = vmatpush1.bf16.msra.mxu0 %v486
    %504 = vmatprep.subr.bf16.mxu0 0
    %505 = vmatpush1.bf16.msra.mxu0 %v487
    %506 = vmatprep.subr.bf16.mxu0 0
    %507 = vmatpush1.bf16.msra.mxu0 0
    %508 = vmatprep.subr.bf16.mxu0 0
    %509 = vmatpush1.bf16.msra.mxu0 0
    %510 = vmatprep.subr.bf16.mxu0 0
    %511 = vmatpush1.bf16.msra.mxu0 0
    %512 = vmatprep.subr.bf16.mxu0 0
    %513 = vmatpush1.bf16.msra.mxu0 0
    %514 = vmatprep.subr.bf16.mxu0 0
    %515 = vmatpush1.bf16.msra.mxu0 0
    %516 = vmatprep.subr.bf16.mxu0 0
    %517 = vmatpush1.bf16.msra.mxu0 0
    %518 = vmatprep.subr.bf16.mxu0 0
    %519 = vmatpush1.bf16.msra.mxu0 0
    %520 = vmatprep.subr.bf16.mxu0 0
    %521 = vmatpush1.bf16.msra.mxu0 0
    %522 = vmatprep.subr.bf16.mxu0 0
    %523 = vmatpush1.bf16.msra.mxu0 0
    %524 = vmatprep.subr.bf16.mxu0 0
    %525 = vmatpush1.bf16.msra.mxu0 0
    %526 = vmatprep.subr.bf16.mxu0 0
    %527 = vmatpush1.bf16.msra.mxu0 0
    %528 = vmatprep.subr.bf16.mxu0 0
    %529 = vmatpush1.bf16.msra.mxu0 0
    %530 = vmatprep.mubr.bf16.mxu0 0
    %531 = vmatmul.mubr.bf16.gmra.mrb[0].mxu0 %v493
    %v532 = vpop.f32.mrb[0].mxu0
    %v533 = vadd.f32 0.0, %v532
    %v534 = vpop.f32.mrb[0].mxu0
    %v535 = vpop.f32.mrb[0].mxu0
    %v536 = vadd.f32 0.0, %v535
    %v537 = vpop.f32.mrb[0].mxu0
    %538 = vmatprep.mubr.bf16.mxu0 0
    %539 = vmatmul.mubr.bf16.gmra.mrb[0].mxu0 %v496
    %v540 = vpop.f32.mrb[0].mxu0
    %v541 = vadd.f32 0.0, %v540
    %v542 = vpop.f32.mrb[0].mxu0
    %v543 = vpop.f32.mrb[0].mxu0
    %v544 = vadd.f32 0.0, %v543
    %v545 = vpop.f32.mrb[0].mxu0
    %546 = vdwg.mxu0
    %v547 = vadd.f32 %v416, %v533
    %v548 = vadd.f32 %v419, %v536
    %v549 = vadd.f32 %v424, %v541
    %v550 = vadd.f32 %v427, %v544
    %v551 = vlaneseq
    %v552 = vshrl.u32 %v551, 7
    %v553 = vsub.s32 0, %v552
    %v554 = vrot.slane %v180, %v553
    %v555 = vadd.f32 %v547, %v554
    %v556 = vadd.f32 %v548, %v554
    %v557 = vadd.f32 %v549, %v554
    %v558 = vadd.f32 %v550, %v554
    %vm559 = vcmp.ge.f32.partialorder %v555, 0.0
    %vm560 = vcmp.ge.f32.partialorder %v556, 0.0
    %vm561 = vcmp.ge.f32.partialorder %v557, 0.0
    %vm562 = vcmp.ge.f32.partialorder %v558, 0.0
    %v563 = vmul.f32 %v555, 0.2
    %v564 = vmul.f32 %v556, 0.2
    %v565 = vmul.f32 %v557, 0.2
    %v566 = vmul.f32 %v558, 0.2
    %v567 = vsel %vm559, %v555, %v563
    %v568 = vsel %vm560, %v556, %v564
    %v569 = vsel %vm561, %v557, %v565
    %v570 = vsel %vm562, %v558, %v566
    %v571 = vpack.c.bf16 %v568, %v567
    %v572 = vpack.c.bf16 %v570, %v569
    %v575 = vunpack.c.l.b16 %v571
    %v576 = vunpack.c.h.b16 %v571
    %v577 = vunpack.c.l.b16 %v572
    %v578 = vunpack.c.h.b16 %v572
    %v579 = vpack.c.b16 %v575, %v575
    %v580 = vpack.c.b16 %v576, %v576
    %v581 = vpack.c.b16 %v577, %v577
    %v582 = vpack.c.b16 %v578, %v578
    %v584 = vshrl.u32 %v579, 16
    %v586 = vrot.slane %v584, 7
    %v587 = vshll.u32 %v579, 16
    %v589 = vor.u32 %v586, %v587
    %v590 = vrot.slane %v586, 4
    %v592 = vshrl.u32 %v580, 16
    %v594 = vrot.slane %v592, 7
    %v595 = vshll.u32 %v580, 16
    %v597 = vor.u32 %v594, %v595
    %v598 = vsel %vm119, %v590, %v597
    %v599 = vrot.slane %v594, 4
    %v601 = vshrl.u32 %v581, 16
    %v603 = vrot.slane %v601, 7
    %v604 = vshll.u32 %v581, 16
    %v606 = vor.u32 %v603, %v604
    %v607 = vrot.slane %v603, 4
    %v609 = vshrl.u32 %v582, 16
    %v611 = vrot.slane %v609, 7
    %v612 = vshll.u32 %v582, 16
    %v614 = vor.u32 %v611, %v612
    %v615 = vsel %vm119, %v607, %v614
    %v616 = vrot.slane %v611, 4
    %vm623 = vcmask 1043456
    %vm624 = vmand %vm623, %vm161
    %v625 = vld [vmem:[#allocation3] sm:$0xf]
    %v626 = vsel %vm624, %v589, %v625
    %627 = vst [vmem:[#allocation3] sm:$0xf] %v626
    %628 = vst [vmem:[#allocation3 + $0x4] sm:$0xf] %v598
    %vm629 = vcmask 1040384
    %vm630 = vmand %vm629, %vm117
    %v631 = vld [vmem:[#allocation3 + $0x8] sm:$0x1]
    %v632 = vsel %vm630, %v599, %v631
    %633 = vst [vmem:[#allocation3 + $0x8] sm:$0x1] %v632
    %v634 = vld [vmem:[#allocation3 + $0xc] sm:$0xf]
    %v635 = vsel %vm624, %v606, %v634
    %636 = vst [vmem:[#allocation3 + $0xc] sm:$0xf] %v635
    %637 = vst [vmem:[#allocation3 + $0x10] sm:$0xf] %v615
    %v638 = vld [vmem:[#allocation3 + $0x14] sm:$0x1]
    %v639 = vsel %vm630, %v616, %v638
    %640 = vst [vmem:[#allocation3 + $0x14] sm:$0x1] %v639
    %v641 = vld [vmem:[#allocation3] sm:$0xf]
    %v642 = vld [vmem:[#allocation3 + $0x4] sm:$0xf]
    %v643 = vld [vmem:[#allocation3 + $0xc] sm:$0xf]
    %v644 = vld [vmem:[#allocation3 + $0x10] sm:$0xf]
    %v645 = vld [vmem:[#allocation9] sm:$0xf]
    %v646 = vld [vmem:[#allocation9 + $0x4] sm:$0xf]
    %v647 = vld [vmem:[#allocation9 + $0x8] sm:$0xf]
    %v648 = vld [vmem:[#allocation9 + $0xc] sm:$0xf]
    %v649 = vld [vmem:[#allocation9 + $0x10] sm:$0xf]
    %v650 = vld [vmem:[#allocation9 + $0x14] sm:$0xf]
    %v651 = vld [vmem:[#allocation9 + $0x18] sm:$0xf]
    %v652 = vld [vmem:[#allocation9 + $0x1c] sm:$0xf]
    %v653 = vld [vmem:[#allocation9 + $0x20] sm:$0xf]
    %v654 = vld [vmem:[#allocation9 + $0x24] sm:$0xf]
    %v655 = vld [vmem:[#allocation9 + $0x28] sm:$0xf]
    %v656 = vld [vmem:[#allocation9 + $0x2c] sm:$0xf]
    %v657 = vld [vmem:[#allocation9 + $0x30] sm:$0xf]
    %v658 = vld [vmem:[#allocation9 + $0x34] sm:$0xf]
    %v659 = vld [vmem:[#allocation9 + $0x38] sm:$0xf]
    %v660 = vld [vmem:[#allocation9 + $0x3c] sm:$0xf]
    %v661 = vld [vmem:[#allocation3 + $0x8] sm:$0x1]
    %v662 = vld [vmem:[#allocation3 + $0x14] sm:$0x1]
    %v664 = vshrl.u32 %v641, 16
    %v666 = vrot.slane %v664, 4
    %v667 = vshll.u32 %v641, 16
    %v669 = vrot.slane %v667, 5
    %v670 = vor.u32 %v666, %v669
    %v671 = vrot.slane %v670, 4
    %v673 = vshll.u32 %v642, 16
    %v675 = vrot.slane %v673, 5
    %v676 = vsel %vm197, %v671, %v675
    %v677 = vshrl.u32 %v642, 16
    %v679 = vrot.slane %v677, 4
    %v680 = vor.u32 %v679, %v675
    %v681 = vrot.slane %v680, 4
    %v683 = vshll.u32 %v661, 16
    %v685 = vrot.slane %v683, 5
    %v686 = vsel %vm197, %v681, %v685
    %v688 = vshrl.u32 %v643, 16
    %v690 = vrot.slane %v688, 4
    %v691 = vshll.u32 %v643, 16
    %v693 = vrot.slane %v691, 5
    %v694 = vor.u32 %v690, %v693
    %v695 = vrot.slane %v694, 4
    %v697 = vshll.u32 %v644, 16
    %v699 = vrot.slane %v697, 5
    %v700 = vsel %vm197, %v695, %v699
    %v701 = vshrl.u32 %v644, 16
    %v703 = vrot.slane %v701, 4
    %v704 = vor.u32 %v703, %v699
    %v705 = vrot.slane %v704, 4
    %v707 = vshll.u32 %v662, 16
    %v709 = vrot.slane %v707, 5
    %v710 = vsel %vm197, %v705, %v709
    %s711 = scalar_lea.vmem [#allocation9], 64
    %v712 = vld [vmem:[%s711] sm:$0xf]
    %v713 = vld [vmem:[%s711 + $0x4] sm:$0xf]
    %v714 = vld [vmem:[%s711 + $0x8] sm:$0xf]
    %v715 = vld [vmem:[%s711 + $0xc] sm:$0xf]
    %v716 = vld [vmem:[%s711 + $0x10] sm:$0xf]
    %v717 = vld [vmem:[%s711 + $0x14] sm:$0xf]
    %v718 = vld [vmem:[%s711 + $0x18] sm:$0xf]
    %v719 = vld [vmem:[%s711 + $0x1c] sm:$0xf]
    %v720 = vld [vmem:[%s711 + $0x20] sm:$0xf]
    %v721 = vld [vmem:[%s711 + $0x24] sm:$0xf]
    %v722 = vld [vmem:[%s711 + $0x28] sm:$0xf]
    %v723 = vld [vmem:[%s711 + $0x2c] sm:$0xf]
    %v724 = vld [vmem:[%s711 + $0x30] sm:$0xf]
    %v725 = vld [vmem:[%s711 + $0x34] sm:$0xf]
    %v726 = vld [vmem:[%s711 + $0x38] sm:$0xf]
    %v727 = vld [vmem:[%s711 + $0x3c] sm:$0xf]
    %v728 = vunpack.c.l.b16 %v676
    %v729 = vunpack.c.l.b16 %v686
    %v730 = vunpack.c.l.b16 %v700
    %v731 = vunpack.c.l.b16 %v710
    %v732 = vpack.c.b16 %v729, %v728
    %v733 = vpack.c.b16 %v731, %v730
    %v752 = vunpack.c.l.b16 %v712
    %v753 = vunpack.c.l.b16 %v713
    %v754 = vunpack.c.l.b16 %v714
    %v755 = vunpack.c.l.b16 %v715
    %v756 = vunpack.c.l.b16 %v716
    %v757 = vunpack.c.l.b16 %v717
    %v758 = vunpack.c.l.b16 %v718
    %v759 = vunpack.c.l.b16 %v719
    %v760 = vunpack.c.l.b16 %v720
    %v761 = vunpack.c.l.b16 %v721
    %v762 = vunpack.c.l.b16 %v722
    %v763 = vunpack.c.l.b16 %v723
    %v764 = vunpack.c.l.b16 %v724
    %v765 = vunpack.c.l.b16 %v725
    %v766 = vunpack.c.l.b16 %v726
    %v767 = vunpack.c.l.b16 %v727
    %v768 = vpack.c.b16 %v753, %v752
    %v769 = vpack.c.b16 %v755, %v754
    %v770 = vpack.c.b16 %v757, %v756
    %v771 = vpack.c.b16 %v759, %v758
    %v772 = vpack.c.b16 %v761, %v760
    %v773 = vpack.c.b16 %v763, %v762
    %v774 = vpack.c.b16 %v765, %v764
    %v775 = vpack.c.b16 %v767, %v766
    %784 = vmatprep.subr.bf16.mxu0 0
    %785 = vmatpush1.bf16.msra.mxu0 %v768
    %786 = vmatprep.subr.bf16.mxu0 0
    %787 = vmatpush1.bf16.msra.mxu0 %v769
    %788 = vmatprep.subr.bf16.mxu0 0
    %789 = vmatpush1.bf16.msra.mxu0 %v770
    %790 = vmatprep.subr.bf16.mxu0 0
    %791 = vmatpush1.bf16.msra.mxu0 %v771
    %792 = vmatprep.subr.bf16.mxu0 0
    %793 = vmatpush1.bf16.msra.mxu0 %v772
    %794 = vmatprep.subr.bf16.mxu0 0
    %795 = vmatpush1.bf16.msra.mxu0 %v773
    %796 = vmatprep.subr.bf16.mxu0 0
    %797 = vmatpush1.bf16.msra.mxu0 %v774
    %798 = vmatprep.subr.bf16.mxu0 0
    %799 = vmatpush1.bf16.msra.mxu0 %v775
    %800 = vmatprep.subr.bf16.mxu0 0
    %801 = vmatpush1.bf16.msra.mxu0 0
    %802 = vmatprep.subr.bf16.mxu0 0
    %803 = vmatpush1.bf16.msra.mxu0 0
    %804 = vmatprep.subr.bf16.mxu0 0
    %805 = vmatpush1.bf16.msra.mxu0 0
    %806 = vmatprep.subr.bf16.mxu0 0
    %807 = vmatpush1.bf16.msra.mxu0 0
    %808 = vmatprep.subr.bf16.mxu0 0
    %809 = vmatpush1.bf16.msra.mxu0 0
    %810 = vmatprep.subr.bf16.mxu0 0
    %811 = vmatpush1.bf16.msra.mxu0 0
    %812 = vmatprep.subr.bf16.mxu0 0
    %813 = vmatpush1.bf16.msra.mxu0 0
    %814 = vmatprep.subr.bf16.mxu0 0
    %815 = vmatpush1.bf16.msra.mxu0 0
    %816 = vmatprep.mubr.bf16.mxu0 0
    %817 = vmatmul.mubr.bf16.gmra.mrb[0].mxu0 %v732
    %v818 = vpop.f32.mrb[0].mxu0
    %v819 = vadd.f32 0.0, %v818
    %v820 = vpop.f32.mrb[0].mxu0
    %v821 = vpop.f32.mrb[0].mxu0
    %v822 = vadd.f32 0.0, %v821
    %v823 = vpop.f32.mrb[0].mxu0
    %824 = vmatprep.mubr.bf16.mxu0 0
    %825 = vmatmul.mubr.bf16.gmra.mrb[0].mxu0 %v733
    %v826 = vpop.f32.mrb[0].mxu0
    %v827 = vadd.f32 0.0, %v826
    %v828 = vpop.f32.mrb[0].mxu0
    %v829 = vpop.f32.mrb[0].mxu0
    %v830 = vadd.f32 0.0, %v829
    %v831 = vpop.f32.mrb[0].mxu0
    %832 = vdwg.mxu0
    %v837 = vunpack.c.l.b16 %v641
    %v838 = vunpack.c.l.b16 %v642
    %v839 = vunpack.c.l.b16 %v643
    %v840 = vunpack.c.l.b16 %v644
    %v841 = vpack.c.b16 %v838, %v837
    %v842 = vpack.c.b16 %v840, %v839
    %v861 = vunpack.c.l.b16 %v645
    %v862 = vunpack.c.l.b16 %v646
    %v863 = vunpack.c.l.b16 %v647
    %v864 = vunpack.c.l.b16 %v648
    %v865 = vunpack.c.l.b16 %v649
    %v866 = vunpack.c.l.b16 %v650
    %v867 = vunpack.c.l.b16 %v651
    %v868 = vunpack.c.l.b16 %v652
    %v869 = vunpack.c.l.b16 %v653
    %v870 = vunpack.c.l.b16 %v654
    %v871 = vunpack.c.l.b16 %v655
    %v872 = vunpack.c.l.b16 %v656
    %v873 = vunpack.c.l.b16 %v657
    %v874 = vunpack.c.l.b16 %v658
    %v875 = vunpack.c.l.b16 %v659
    %v876 = vunpack.c.l.b16 %v660
    %v877 = vpack.c.b16 %v862, %v861
    %v878 = vpack.c.b16 %v864, %v863
    %v879 = vpack.c.b16 %v866, %v865
    %v880 = vpack.c.b16 %v868, %v867
    %v881 = vpack.c.b16 %v870, %v869
    %v882 = vpack.c.b16 %v872, %v871
    %v883 = vpack.c.b16 %v874, %v873
    %v884 = vpack.c.b16 %v876, %v875
    %893 = vmatprep.subr.bf16.mxu0 0
    %894 = vmatpush1.bf16.msra.mxu0 %v877
    %895 = vmatprep.subr.bf16.mxu0 0
    %896 = vmatpush1.bf16.msra.mxu0 %v878
    %897 = vmatprep.subr.bf16.mxu0 0
    %898 = vmatpush1.bf16.msra.mxu0 %v879
    %899 = vmatprep.subr.bf16.mxu0 0
    %900 = vmatpush1.bf16.msra.mxu0 %v880
    %901 = vmatprep.subr.bf16.mxu0 0
    %902 = vmatpush1.bf16.msra.mxu0 %v881
    %903 = vmatprep.subr.bf16.mxu0 0
    %904 = vmatpush1.bf16.msra.mxu0 %v882
    %905 = vmatprep.subr.bf16.mxu0 0
    %906 = vmatpush1.bf16.msra.mxu0 %v883
    %907 = vmatprep.subr.bf16.mxu0 0
    %908 = vmatpush1.bf16.msra.mxu0 %v884
    %909 = vmatprep.subr.bf16.mxu0 0
    %910 = vmatpush1.bf16.msra.mxu0 0
    %911 = vmatprep.subr.bf16.mxu0 0
    %912 = vmatpush1.bf16.msra.mxu0 0
    %913 = vmatprep.subr.bf16.mxu0 0
    %914 = vmatpush1.bf16.msra.mxu0 0
    %915 = vmatprep.subr.bf16.mxu0 0
    %916 = vmatpush1.bf16.msra.mxu0 0
    %917 = vmatprep.subr.bf16.mxu0 0
    %918 = vmatpush1.bf16.msra.mxu0 0
    %919 = vmatprep.subr.bf16.mxu0 0
    %920 = vmatpush1.bf16.msra.mxu0 0
    %921 = vmatprep.subr.bf16.mxu0 0
    %922 = vmatpush1.bf16.msra.mxu0 0
    %923 = vmatprep.subr.bf16.mxu0 0
    %924 = vmatpush1.bf16.msra.mxu0 0
    %925 = vmatprep.mubr.bf16.mxu0 0
    %926 = vmatmul.mubr.bf16.gmra.mrb[0].mxu0 %v841
    %v927 = vpop.f32.mrb[0].mxu0
    %v928 = vadd.f32 %v819, %v927
    %v929 = vpop.f32.mrb[0].mxu0
    %v930 = vpop.f32.mrb[0].mxu0
    %v931 = vadd.f32 %v822, %v930
    %v932 = vpop.f32.mrb[0].mxu0
    %933 = vmatprep.mubr.bf16.mxu0 0
    %934 = vmatmul.mubr.bf16.gmra.mrb[0].mxu0 %v842
    %v935 = vpop.f32.mrb[0].mxu0
    %v936 = vadd.f32 %v827, %v935
    %v937 = vpop.f32.mrb[0].mxu0
    %v938 = vpop.f32.mrb[0].mxu0
    %v939 = vadd.f32 %v830, %v938
    %v940 = vpop.f32.mrb[0].mxu0
    %941 = vdwg.mxu0
    %v942 = vld [vmem:[#allocation3] sm:$0xe]
    %v943 = vld [vmem:[#allocation3 + $0xc] sm:$0xe]
    %v948 = vrot.slane %v942, 5
    %v949 = vrot.slane %v948, 4
    %v950 = vrot.slane %v642, 5
    %v951 = vsel %vm438, %v949, %v950
    %v952 = vrot.slane %v950, 4
    %v953 = vrot.slane %v661, 5
    %v954 = vsel %vm438, %v952, %v953
    %v955 = vrot.slane %v943, 5
    %v956 = vrot.slane %v955, 4
    %v957 = vrot.slane %v644, 5
    %v958 = vsel %vm438, %v956, %v957
    %v959 = vrot.slane %v957, 4
    %v960 = vrot.slane %v662, 5
    %v961 = vsel %vm438, %v959, %v960
    %s962 = scalar_lea.vmem [#allocation9], 128
    %v963 = vld [vmem:[%s962] sm:$0xf]
    %v964 = vld [vmem:[%s962 + $0x4] sm:$0xf]
    %v965 = vld [vmem:[%s962 + $0x8] sm:$0xf]
    %v966 = vld [vmem:[%s962 + $0xc] sm:$0xf]
    %v967 = vld [vmem:[%s962 + $0x10] sm:$0xf]
    %v968 = vld [vmem:[%s962 + $0x14] sm:$0xf]
    %v969 = vld [vmem:[%s962 + $0x18] sm:$0xf]
    %v970 = vld [vmem:[%s962 + $0x1c] sm:$0xf]
    %v971 = vld [vmem:[%s962 + $0x20] sm:$0xf]
    %v972 = vld [vmem:[%s962 + $0x24] sm:$0xf]
    %v973 = vld [vmem:[%s962 + $0x28] sm:$0xf]
    %v974 = vld [vmem:[%s962 + $0x2c] sm:$0xf]
    %v975 = vld [vmem:[%s962 + $0x30] sm:$0xf]
    %v976 = vld [vmem:[%s962 + $0x34] sm:$0xf]
    %v977 = vld [vmem:[%s962 + $0x38] sm:$0xf]
    %v978 = vld [vmem:[%s962 + $0x3c] sm:$0xf]
    %v979 = vunpack.c.l.b16 %v951
    %v980 = vunpack.c.l.b16 %v954
    %v981 = vunpack.c.l.b16 %v958
    %v982 = vunpack.c.l.b16 %v961
    %v983 = vpack.c.b16 %v980, %v979
    %v984 = vpack.c.b16 %v982, %v981
    %v1003 = vunpack.c.l.b16 %v963
    %v1004 = vunpack.c.l.b16 %v964
    %v1005 = vunpack.c.l.b16 %v965
    %v1006 = vunpack.c.l.b16 %v966
    %v1007 = vunpack.c.l.b16 %v967
    %v1008 = vunpack.c.l.b16 %v968
    %v1009 = vunpack.c.l.b16 %v969
    %v1010 = vunpack.c.l.b16 %v970
    %v1011 = vunpack.c.l.b16 %v971
    %v1012 = vunpack.c.l.b16 %v972
    %v1013 = vunpack.c.l.b16 %v973
    %v1014 = vunpack.c.l.b16 %v974
    %v1015 = vunpack.c.l.b16 %v975
    %v1016 = vunpack.c.l.b16 %v976
    %v1017 = vunpack.c.l.b16 %v977
    %v1018 = vunpack.c.l.b16 %v978
    %v1019 = vpack.c.b16 %v1004, %v1003
    %v1020 = vpack.c.b16 %v1006, %v1005
    %v1021 = vpack.c.b16 %v1008, %v1007
    %v1022 = vpack.c.b16 %v1010, %v1009
    %v1023 = vpack.c.b16 %v1012, %v1011
    %v1024 = vpack.c.b16 %v1014, %v1013
    %v1025 = vpack.c.b16 %v1016, %v1015
    %v1026 = vpack.c.b16 %v1018, %v1017
    %1035 = vmatprep.subr.bf16.mxu0 0
    %1036 = vmatpush1.bf16.msra.mxu0 %v1019
    %1037 = vmatprep.subr.bf16.mxu0 0
    %1038 = vmatpush1.bf16.msra.mxu0 %v1020
    %1039 = vmatprep.subr.bf16.mxu0 0
    %1040 = vmatpush1.bf16.msra.mxu0 %v1021
    %1041 = vmatprep.subr.bf16.mxu0 0
    %1042 = vmatpush1.bf16.msra.mxu0 %v1022
    %1043 = vmatprep.subr.bf16.mxu0 0
    %1044 = vmatpush1.bf16.msra.mxu0 %v1023
    %1045 = vmatprep.subr.bf16.mxu0 0
    %1046 = vmatpush1.bf16.msra.mxu0 %v1024
    %1047 = vmatprep.subr.bf16.mxu0 0
    %1048 = vmatpush1.bf16.msra.mxu0 %v1025
    %1049 = vmatprep.subr.bf16.mxu0 0
    %1050 = vmatpush1.bf16.msra.mxu0 %v1026
    %1051 = vmatprep.subr.bf16.mxu0 0
    %1052 = vmatpush1.bf16.msra.mxu0 0
    %1053 = vmatprep.subr.bf16.mxu0 0
    %1054 = vmatpush1.bf16.msra.mxu0 0
    %1055 = vmatprep.subr.bf16.mxu0 0
    %1056 = vmatpush1.bf16.msra.mxu0 0
    %1057 = vmatprep.subr.bf16.mxu0 0
    %1058 = vmatpush1.bf16.msra.mxu0 0
    %1059 = vmatprep.subr.bf16.mxu0 0
    %1060 = vmatpush1.bf16.msra.mxu0 0
    %1061 = vmatprep.subr.bf16.mxu0 0
    %1062 = vmatpush1.bf16.msra.mxu0 0
    %1063 = vmatprep.subr.bf16.mxu0 0
    %1064 = vmatpush1.bf16.msra.mxu0 0
    %1065 = vmatprep.subr.bf16.mxu0 0
    %1066 = vmatpush1.bf16.msra.mxu0 0
    %1067 = vmatprep.mubr.bf16.mxu0 0
    %1068 = vmatmul.mubr.bf16.gmra.mrb[0].mxu0 %v983
    %v1069 = vpop.f32.mrb[0].mxu0
    %v1070 = vadd.f32 0.0, %v1069
    %v1071 = vpop.f32.mrb[0].mxu0
    %v1072 = vpop.f32.mrb[0].mxu0
    %v1073 = vadd.f32 0.0, %v1072
    %v1074 = vpop.f32.mrb[0].mxu0
    %1075 = vmatprep.mubr.bf16.mxu0 0
    %1076 = vmatmul.mubr.bf16.gmra.mrb[0].mxu0 %v984
    %v1077 = vpop.f32.mrb[0].mxu0
    %v1078 = vadd.f32 0.0, %v1077
    %v1079 = vpop.f32.mrb[0].mxu0
    %v1080 = vpop.f32.mrb[0].mxu0
    %v1081 = vadd.f32 0.0, %v1080
    %v1082 = vpop.f32.mrb[0].mxu0
    %1083 = vdwg.mxu0
    %v1084 = vadd.f32 %v928, %v1070
    %v1085 = vadd.f32 %v931, %v1073
    %v1086 = vadd.f32 %v936, %v1078
    %v1087 = vadd.f32 %v939, %v1081
    %v1088 = vlaneseq
    %v1089 = vshrl.u32 %v1088, 7
    %v1090 = vsub.s32 1, %v1089
    %v1091 = vrot.slane %v180, %v1090
    %v1092 = vadd.f32 %v1084, %v1091
    %v1093 = vadd.f32 %v1085, %v1091
    %v1094 = vadd.f32 %v1086, %v1091
    %v1095 = vadd.f32 %v1087, %v1091
    %v1096 = vld [vmem:[#allocation2] sm:$0xf]
    %v1097 = vld [vmem:[#allocation2 + $0x4] sm:$0xf]
    %v1098 = vld [vmem:[#allocation2 + $0x8] sm:$0x1]
    %v1099 = vld [vmem:[#allocation2 + $0xc] sm:$0xf]
    %v1100 = vld [vmem:[#allocation2 + $0x10] sm:$0xf]
    %v1101 = vld [vmem:[#allocation2 + $0x14] sm:$0x1]
    %v1103 = vshrl.u32 %v1096, 16
    %v1105 = vrot.slane %v1103, 4
    %v1106 = vshll.u32 %v1096, 16
    %v1108 = vrot.slane %v1106, 5
    %v1109 = vor.u32 %v1105, %v1108
    %v1110 = vrot.slane %v1109, 4
    %v1112 = vshll.u32 %v1097, 16
    %v1114 = vrot.slane %v1112, 5
    %v1115 = vsel %vm197, %v1110, %v1114
    %v1116 = vshrl.u32 %v1097, 16
    %v1118 = vrot.slane %v1116, 4
    %v1119 = vor.u32 %v1118, %v1114
    %v1120 = vrot.slane %v1119, 4
    %v1122 = vshll.u32 %v1098, 16
    %v1124 = vrot.slane %v1122, 5
    %v1125 = vsel %vm197, %v1120, %v1124
    %v1127 = vshrl.u32 %v1099, 16
    %v1129 = vrot.slane %v1127, 4
    %v1130 = vshll.u32 %v1099, 16
    %v1132 = vrot.slane %v1130, 5
    %v1133 = vor.u32 %v1129, %v1132
    %v1134 = vrot.slane %v1133, 4
    %v1136 = vshll.u32 %v1100, 16
    %v1138 = vrot.slane %v1136, 5
    %v1139 = vsel %vm197, %v1134, %v1138
    %v1140 = vshrl.u32 %v1100, 16
    %v1142 = vrot.slane %v1140, 4
    %v1143 = vor.u32 %v1142, %v1138
    %v1144 = vrot.slane %v1143, 4
    %v1146 = vshll.u32 %v1101, 16
    %v1148 = vrot.slane %v1146, 5
    %v1149 = vsel %vm197, %v1144, %v1148
    %v1150 = vld [vmem:[#allocation10] sm:$0xf]
    %v1151 = vld [vmem:[#allocation10 + $0x4] sm:$0xf]
    %v1152 = vld [vmem:[#allocation10 + $0x8] sm:$0xf]
    %v1153 = vld [vmem:[#allocation10 + $0xc] sm:$0xf]
    %v1154 = vld [vmem:[#allocation10 + $0x10] sm:$0xf]
    %v1155 = vld [vmem:[#allocation10 + $0x14] sm:$0xf]
    %v1156 = vld [vmem:[#allocation10 + $0x18] sm:$0xf]
    %v1157 = vld [vmem:[#allocation10 + $0x1c] sm:$0xf]
    %v1158 = vunpack.c.l.b16 %v1115
    %v1159 = vunpack.c.l.b16 %v1125
    %v1160 = vunpack.c.l.b16 %v1139
    %v1161 = vunpack.c.l.b16 %v1149
    %v1162 = vpack.c.b16 %v1159, %v1158
    %v1163 = vpack.c.b16 %v1161, %v1160
    %v1172 = vunpack.c.l.b16 %v1150
    %v1173 = vunpack.c.l.b16 %v1151
    %v1174 = vunpack.c.l.b16 %v1152
    %v1175 = vunpack.c.l.b16 %v1153
    %v1176 = vunpack.c.l.b16 %v1154
    %v1177 = vunpack.c.l.b16 %v1155
    %v1178 = vunpack.c.l.b16 %v1156
    %v1179 = vunpack.c.l.b16 %v1157
    %v1180 = vpack.c.b16 %v1173, %v1172
    %v1181 = vpack.c.b16 %v1175, %v1174
    %v1182 = vpack.c.b16 %v1177, %v1176
    %v1183 = vpack.c.b16 %v1179, %v1178
    %v1189 = vsel %vm285, %v1162, 0
    %v1192 = vsel %vm285, %v1163, 0
    %1194 = vmatprep.subr.bf16.mxu0 0
    %1195 = vmatpush1.bf16.msra.mxu0 %v1180
    %1196 = vmatprep.subr.bf16.mxu0 0
    %1197 = vmatpush1.bf16.msra.mxu0 %v1181
    %1198 = vmatprep.subr.bf16.mxu0 0
    %1199 = vmatpush1.bf16.msra.mxu0 %v1182
    %1200 = vmatprep.subr.bf16.mxu0 0
    %1201 = vmatpush1.bf16.msra.mxu0 %v1183
    %1202 = vmatprep.subr.bf16.mxu0 0
    %1203 = vmatpush1.bf16.msra.mxu0 0
    %1204 = vmatprep.subr.bf16.mxu0 0
    %1205 = vmatpush1.bf16.msra.mxu0 0
    %1206 = vmatprep.subr.bf16.mxu0 0
    %1207 = vmatpush1.bf16.msra.mxu0 0
    %1208 = vmatprep.subr.bf16.mxu0 0
    %1209 = vmatpush1.bf16.msra.mxu0 0
    %1210 = vmatprep.subr.bf16.mxu0 0
    %1211 = vmatpush1.bf16.msra.mxu0 0
    %1212 = vmatprep.subr.bf16.mxu0 0
    %1213 = vmatpush1.bf16.msra.mxu0 0
    %1214 = vmatprep.subr.bf16.mxu0 0
    %1215 = vmatpush1.bf16.msra.mxu0 0
    %1216 = vmatprep.subr.bf16.mxu0 0
    %1217 = vmatpush1.bf16.msra.mxu0 0
    %1218 = vmatprep.subr.bf16.mxu0 0
    %1219 = vmatpush1.bf16.msra.mxu0 0
    %1220 = vmatprep.subr.bf16.mxu0 0
    %1221 = vmatpush1.bf16.msra.mxu0 0
    %1222 = vmatprep.subr.bf16.mxu0 0
    %1223 = vmatpush1.bf16.msra.mxu0 0
    %1224 = vmatprep.subr.bf16.mxu0 0
    %1225 = vmatpush1.bf16.msra.mxu0 0
    %1226 = vmatprep.mubr.bf16.mxu0 0
    %1227 = vmatmul.mubr.bf16.gmra.mrb[0].mxu0 %v1189
    %v1228 = vpop.f32.mrb[0].mxu0
    %v1229 = vadd.f32 0.0, %v1228
    %v1230 = vpop.f32.mrb[0].mxu0
    %v1231 = vpop.f32.mrb[0].mxu0
    %v1232 = vadd.f32 0.0, %v1231
    %v1233 = vpop.f32.mrb[0].mxu0
    %1234 = vmatprep.mubr.bf16.mxu0 0
    %1235 = vmatmul.mubr.bf16.gmra.mrb[0].mxu0 %v1192
    %v1236 = vpop.f32.mrb[0].mxu0
    %v1237 = vadd.f32 0.0, %v1236
    %v1238 = vpop.f32.mrb[0].mxu0
    %v1239 = vpop.f32.mrb[0].mxu0
    %v1240 = vadd.f32 0.0, %v1239
    %v1241 = vpop.f32.mrb[0].mxu0
    %1242 = vdwg.mxu0
    %v1243 = vadd.f32 %v1092, %v1229
    %v1244 = vadd.f32 %v1093, %v1232
    %v1245 = vadd.f32 %v1094, %v1237
    %v1246 = vadd.f32 %v1095, %v1240
    %vm1247 = vcmp.ge.f32.partialorder %v1243, 0.0
    %vm1248 = vcmp.ge.f32.partialorder %v1244, 0.0
    %vm1249 = vcmp.ge.f32.partialorder %v1245, 0.0
    %vm1250 = vcmp.ge.f32.partialorder %v1246, 0.0
    %v1251 = vmul.f32 %v1243, 0.2
    %v1252 = vmul.f32 %v1244, 0.2
    %v1253 = vmul.f32 %v1245, 0.2
    %v1254 = vmul.f32 %v1246, 0.2
    %v1255 = vsel %vm1247, %v1243, %v1251
    %v1256 = vsel %vm1248, %v1244, %v1252
    %v1257 = vsel %vm1249, %v1245, %v1253
    %v1258 = vsel %vm1250, %v1246, %v1254
    %v1259 = vpack.c.bf16 %v1256, %v1255
    %v1260 = vpack.c.bf16 %v1258, %v1257
    %v1263 = vunpack.c.l.b16 %v1259
    %v1264 = vunpack.c.h.b16 %v1259
    %v1265 = vunpack.c.l.b16 %v1260
    %v1266 = vunpack.c.h.b16 %v1260
    %v1267 = vpack.c.b16 %v1263, %v1263
    %v1268 = vpack.c.b16 %v1264, %v1264
    %v1269 = vpack.c.b16 %v1265, %v1265
    %v1270 = vpack.c.b16 %v1266, %v1266
    %1275 = vst [vmem:[#allocation12] sm:$0xf] %v1267
    %1276 = vst [vmem:[#allocation12 + $0x4] sm:$0xf] %v1268
    %1277 = vst [vmem:[#allocation12 + $0x8] sm:$0xf] %v1269
    %1278 = vst [vmem:[#allocation12 + $0xc] sm:$0xf] %v1270
    // Predicated region
    $region42: #{tpu_custom_call.1} parent=1 // pred_check
      _
    $region43: #{tpu_custom_call.1} parent=1 // pred_check_branch
      %1280 = sbr.rel (0) target = $region45
    $region44: #{tpu_custom_call.1} parent=1 // pred_region
      %s1282 = ssub.s32 256, 256
      %1283 = vsyncadd [#allocation6], %s1282
      %s1284 = sshll.u32 [#allocation12], 4
      %s1285 = int_to_ptr.vmem [resolvable:$true] %s1284
      %1290 = dma.vmem_to_hbm [thread:$0]  %s1285, 256, %s5, [#allocation6], 64, 64, 4
    $region45: #{tpu_custom_call.1} parent=1 // pred_fallthru
      _
    // Predicated region
    $region46: #{tpu_custom_call.1} parent=1 // pred_check
      _
    $region47: #{tpu_custom_call.1} parent=1 // pred_check_branch
      %1292 = sbr.rel (0) target = $region49
    $region48: #{tpu_custom_call.1} parent=1 // pred_region
      %1293 = dma.done [#allocation6], 256
    $region49: #{tpu_custom_call.1} parent=1 // pred_fallthru
      _
    %1294 = vsyncpa [#allocation5], 1
    %1295 = vsyncpa [#allocation8], 1
    %1296 = vsyncpa [#allocation11], 1
    %1297 = vsyncpa [#allocation6], 1

</llo_original>
